<compile_context>
chip_gen: v5e
topology: v5e:2x2
jax: 0.10.0
libtpu: 0.0.40
codegen_flags: <defaults>
</compile_context>

<pallas_src>
import functools

import jax
import jax.numpy as jnp
from jax.experimental import pallas as pl
from jax.experimental.pallas import tpu as pltpu


# ----------------------------------------------------------------------------
# Pallas kernel
# ----------------------------------------------------------------------------
def _lstm_forecaster_kernel(x_ref, w_ref, b_ref, out_ref, *,
                            W, H, s_dim, hidden_dim, B, w_offs, b_offs):
    """Full LSTMForecaster forward pass on one TensorCore.

    x_ref  : (W*B, s_dim) bf16   time-major flattened input window
    w_ref  : (Rw, 128)    bf16   packed matmul-operand slab (w_ih/w_hh/w_roll/w_ed_x/V)
    b_ref  : (Rb, 128)    f32    packed bias slab (b_gate/b_roll/b_total)
    out_ref: (B, H*s_dim) f32    s_hat
    """
    HD = hidden_dim
    G = 4 * HD
    HS = H * s_dim
    f32 = jnp.float32
    bf16 = jnp.bfloat16

    # Static views into the packed slabs (zero runtime indexing cost).
    w_ih = w_ref[w_offs["w_ih"]:w_offs["w_ih"] + s_dim, 0:G]          # (s, 4HD)
    w_hh = w_ref[w_offs["w_hh"]:w_offs["w_hh"] + HD, 0:G]             # (HD, 4HD)
    w_roll = w_ref[w_offs["w_roll"]:w_offs["w_roll"] + HD, 0:G]       # (HD, 4HD)
    w_ed_x = w_ref[w_offs["w_ed_x"]:w_offs["w_ed_x"] + s_dim, 0:HS]   # (s, HS)
    b_gate = b_ref[b_offs["b_gate"]:b_offs["b_gate"] + 1, 0:G]        # (1, 4HD) f32
    b_roll = b_ref[b_offs["b_roll"]:b_offs["b_roll"] + 1, 0:G]        # (1, 4HD) f32
    b_total = b_ref[b_offs["b_total"]:b_offs["b_total"] + 1, 0:HS]    # (1, HS)  f32

    x = x_ref[...]                                   # (W*B, s) bf16, time-major

    # Batched x-contribution to ALL warm-up gates: one MXU push, off the serial chain.
    xg = jnp.dot(x, w_ih, preferred_element_type=f32) + b_gate        # (W*B, 4HD) f32

    h = jnp.zeros((B, HD), f32)
    c = jnp.zeros((B, HD), f32)

    def cell(gates, c):
        # One EUP sigmoid over all 4*HD lanes; g-gate columns were pre-scaled by 2
        # in the wrapper so tanh(pre_g) = 2*sigmoid(2*pre_g) - 1 (single VPU fma).
        sig = jax.nn.sigmoid(gates)
        i_g = sig[:, 0:HD]
        f_g = sig[:, HD:2 * HD]
        g_g = 2.0 * sig[:, 2 * HD:3 * HD] - 1.0
        o_g = sig[:, 3 * HD:4 * HD]
        c_new = f_g * c + i_g * g_g
        h_new = o_g * jnp.tanh(c_new)
        return h_new, c_new

    # --- warm-up: one aligned (B,HD)@(HD,4HD) bf16 matmul per step ----------------
    for t in range(W):                               # W static -> fully unrolled
        gates = jnp.dot(h.astype(bf16), w_hh, preferred_element_type=f32) \
            + xg[t * B:(t + 1) * B, :]
        h, c = cell(gates, c)

    # --- folded head+tail epilogue accumulator (all off the critical path) --------
    x_last = x[(W - 1) * B:W * B, :]                                  # (B, s) bf16
    acc = jnp.dot(x_last, w_ed_x, preferred_element_type=f32) + b_total  # (B, HS)

    h_bf = h.astype(bf16)
    v0 = w_ref[w_offs["v_all"]:w_offs["v_all"] + HD, 0:HS]            # horizon 1
    acc = acc + jnp.dot(h_bf, v0, preferred_element_type=f32)

    # --- autoregressive rollout: folded head -> one matmul per step on the chain;
    #     the V_h matmul is filler in MXU slack (acc never feeds back) -------------
    for k in range(H - 2):
        gates = jnp.dot(h_bf, w_roll, preferred_element_type=f32) + b_roll
        h, c = cell(gates, c)
        h_bf = h.astype(bf16)
        vk = w_ref[w_offs["v_all"] + (k + 1) * HD:
                   w_offs["v_all"] + (k + 2) * HD, 0:HS]
        acc = acc + jnp.dot(h_bf, vk, preferred_element_type=f32)

    out_ref[...] = acc


# ----------------------------------------------------------------------------
# Wrapper: gate scaling, algebraic folds and slab packing stay in plain JAX.
# (With params held constant these folds are one-time / jit-foldable.)
# ----------------------------------------------------------------------------
def lstm_forecaster_forward(x, params, *, W, H, s_dim, hidden_dim, z_dim):
    assert H >= 2, "H must be >= 2 (module concatenates last input + H-1 forecasts)"
    B = x.shape[0]
    assert x.shape[1] == W * s_dim
    HD = hidden_dim
    G = 4 * HD
    HS = H * s_dim
    f32, bf16 = jnp.float32, jnp.bfloat16

    # Time-major flattened input: rows [t*B + b] = x[b, t, :].
    x_tm = jnp.transpose(x.reshape(B, W, s_dim).astype(f32), (1, 0, 2))
    x_tm = x_tm.reshape(W * B, s_dim).astype(bf16)

    # Pre-transposed weights, torch gate order (i, f, g, o).
    w_ih = params["w_ih"].T.astype(f32)                                # (s, 4HD)
    w_hh = params["w_hh"].T.astype(f32)                                # (HD, 4HD)
    b_g = (params["b_ih"] + params["b_hh"]).reshape(1, -1).astype(f32)  # (1, 4HD)

    # Scale g-gate (cell-gate) columns by 2 so tanh(x) = 2*sigmoid(2x)-1 in-kernel.
    def scale_g(a):
        return a.at[:, 2 * HD:3 * HD].multiply(2.0)
    w_ih, w_hh, b_g = scale_g(w_ih), scale_g(w_hh), scale_g(b_g)

    lw = params["lin_w"].T.astype(f32)                                 # (HD, s)
    lb = params["lin_b"].reshape(1, -1).astype(f32)                    # (1, s)

    # Rollout head fold: x_{t+1} = h_t @ lw + lb  =>  gates = h @ w_roll + b_roll.
    w_roll = lw @ w_ih + w_hh                                          # (HD, 4HD)
    b_roll = lb @ w_ih + b_g                                           # (1, 4HD)

    # Fused encoder+decoder tail, split per horizon and folded with the head.
    ew = params["enc_w"].T.astype(f32)                                 # (HS, z)
    dw = params["dec_w"].T.astype(f32)                                 # (z, HS)
    w_ed = ew @ dw                                                     # (HS, HS)
    b_ed = (params["enc_b"].reshape(1, -1).astype(f32) @ dw
            + params["dec_b"].reshape(1, -1).astype(f32))              # (1, HS)

    w_ed_x = w_ed[0:s_dim, :]                                          # (s, HS)
    v_all = jnp.concatenate(
        [lw @ w_ed[h * s_dim:(h + 1) * s_dim, :] for h in range(1, H)],
        axis=0)                                                        # ((H-1)*HD, HS)
    b_total = b_ed + lb @ jnp.sum(
        w_ed[s_dim:, :].reshape(H - 1, s_dim, HS), axis=0)             # (1, HS)

    # Pack matmul operands into one bf16 slab, biases into a small f32 slab.
    lanes = max(128, ((max(G, HS, s_dim) + 127) // 128) * 128)

    def pad_to(a, row_mult):
        r, c = a.shape
        rp = ((r + row_mult - 1) // row_mult) * row_mult
        return jnp.pad(a, ((0, rp - r), (0, lanes - c)))

    w_items = [("w_ih", w_ih), ("w_hh", w_hh), ("w_roll", w_roll),
               ("w_ed_x", w_ed_x), ("v_all", v_all)]
    w_offs, w_blocks, row = {}, [], 0
    for name, a in w_items:
        pa = pad_to(a, 16)                      # 16-row alignment for bf16 packing
        w_offs[name] = row
        row += pa.shape[0]
        w_blocks.append(pa)
    w_slab = jnp.concatenate(w_blocks, axis=0).astype(bf16)            # (Rw, lanes)

    b_items = [("b_gate", b_g), ("b_roll", b_roll), ("b_total", b_total)]
    b_offs, b_blocks, rowb = {}, [], 0
    for name, a in b_items:
        pa = pad_to(a, 8)
        b_offs[name] = rowb
        rowb += pa.shape[0]
        b_blocks.append(pa)
    b_slab = jnp.concatenate(b_blocks, axis=0)                         # (Rb, lanes) f32

    kernel = functools.partial(_lstm_forecaster_kernel,
                               W=W, H=H, s_dim=s_dim, hidden_dim=HD, B=B,
                               w_offs=w_offs, b_offs=b_offs)

    # Advisory cost estimate so XLA can schedule/overlap this tiny custom call.
    flops = 2 * (W * B * s_dim * G            # xg precompute
                 + W * B * HD * G             # warm-up cell matmuls
                 + (H - 2) * B * HD * G       # rollout cell matmuls
                 + (H - 1) * B * HD * HS      # folded head+tail V matmuls
                 + B * s_dim * HS)            # x_last tail term
    transcendentals = (W + H - 2) * B * 5 * HD
    bytes_accessed = (x_tm.size * 2 + w_slab.size * 2
                      + b_slab.size * 4 + B * HS * 4)

    vmem = pl.BlockSpec(memory_space=pltpu.MemorySpace.VMEM)
    return pl.pallas_call(
        kernel,
        out_shape=jax.ShapeDtypeStruct((B, HS), jnp.float32),
        in_specs=[vmem, vmem, vmem],
        out_specs=vmem,
        cost_estimate=pl.CostEstimate(flops=flops,
                                      transcendentals=transcendentals,
                                      bytes_accessed=bytes_accessed),
    )(x_tm, w_slab, b_slab)


# ----------------------------------------------------------------------------
# Pure-JAX reference (mirrors the PyTorch forward) for a correctness check
# ----------------------------------------------------------------------------
def reference_forward(x, p, *, W, H, s_dim, hidden_dim, z_dim):
    B = x.shape[0]
    xb = x.reshape(B, W, s_dim)
    h = jnp.zeros((B, hidden_dim), jnp.float32)
    c = jnp.zeros((B, hidden_dim), jnp.float32)

    def cell(xt, h, c):
        g = xt @ p["w_ih"].T + p["b_ih"] + h @ p["w_hh"].T + p["b_hh"]
        i_g, f_g, g_g, o_g = jnp.split(g, 4, axis=1)
        c = jax.nn.sigmoid(f_g) * c + jax.nn.sigmoid(i_g) * jnp.tanh(g_g)
        h = jax.nn.sigmoid(o_g) * jnp.tanh(c)
        return h, c

    xt = fc = None
    for t in range(W):
        xt = xb[:, t, :]
        h, c = cell(xt, h, c)
        fc = h @ p["lin_w"].T + p["lin_b"]
    outs = [xt, fc]
    for _ in range(H - 2):
        h, c = cell(fc, h, c)
        fc = h @ p["lin_w"].T + p["lin_b"]
        outs.append(fc)
    flat = jnp.concatenate(outs, axis=-1)                              # (B, H*s_dim)
    z = flat @ p["enc_w"].T + p["enc_b"]
    return z @ p["dec_w"].T + p["dec_b"]


# ----------------------------------------------------------------------------
# Deterministic parameter construction (PyTorch-style uniform init shapes)
# ----------------------------------------------------------------------------
def make_params(key, *, W, H, s_dim, hidden_dim, z_dim):
    ks = jax.random.split(key, 10)
    k_lstm = 1.0 / jnp.sqrt(hidden_dim)
    k_lin = 1.0 / jnp.sqrt(hidden_dim)
    k_enc = 1.0 / jnp.sqrt(s_dim * H)
    k_dec = 1.0 / jnp.sqrt(z_dim)
    u = lambda k, shape, s: jax.random.uniform(k, shape, jnp.float32, -s, s)
    return {
        "w_ih": u(ks[0], (4 * hidden_dim, s_dim), k_lstm),
        "w_hh": u(ks[1], (4 * hidden_dim, hidden_dim), k_lstm),
        "b_ih": u(ks[2], (4 * hidden_dim,), k_lstm),
        "b_hh": u(ks[3], (4 * hidden_dim,), k_lstm),
        "lin_w": u(ks[4], (s_dim, hidden_dim), k_lin),
        "lin_b": u(ks[5], (s_dim,), k_lin),
        "enc_w": u(ks[6], (z_dim, s_dim * H), k_enc),
        "enc_b": u(ks[7], (z_dim,), k_enc),
        "dec_w": u(ks[8], (s_dim * H, z_dim), k_dec),
        "dec_b": u(ks[9], (s_dim * H,), k_dec),
    }


if __name__ == "__main__":
    # Small shapes consistent with the module's forward.
    B, W, H, S_DIM, HIDDEN, Z_DIM = 2, 8, 8, 4, 32, 16

    key = jax.random.PRNGKey(0)
    k_x, k_p = jax.random.split(key)
    x = jax.random.normal(k_x, (B, W * S_DIM), jnp.float32)   # (2, 32)
    params = make_params(k_p, W=W, H=H, s_dim=S_DIM, hidden_dim=HIDDEN, z_dim=Z_DIM)

    s_hat = lstm_forecaster_forward(x, params, W=W, H=H, s_dim=S_DIM,
                                    hidden_dim=HIDDEN, z_dim=Z_DIM)
    s_hat = jax.block_until_ready(s_hat)

    ref = reference_forward(x, params, W=W, H=H, s_dim=S_DIM,
                            hidden_dim=HIDDEN, z_dim=Z_DIM)
    assert s_hat.shape == (B, H * S_DIM)
    # Tolerance accounts for bf16 MXU operands (f32 accumulation) plus the algebraic
    # folds (rollout head fold, enc@dec fold, head+tail fold) changing f32 rounding;
    # semantics are identical to the reference.
    assert jnp.allclose(s_hat, ref, atol=2e-2, rtol=2e-2), "mismatch vs reference"

    print("KERNEL_OK")
</pallas_src>

<mosaic_0001>
module attributes {stable_mosaic.version = 11 : i64} {
  func.func @_lstm_forecaster_kernel(%arg0: memref<16x4xbf16, #tpu.memory_space<vmem>>, %arg1: memref<320x128xbf16, #tpu.memory_space<vmem>>, %arg2: memref<24x128xf32, #tpu.memory_space<vmem>>, %arg3: memref<2x32xf32, #tpu.memory_space<vmem>>) attributes {dimension_semantics = [], scalar_prefetch = 0 : i64, scratch_operands = 0 : i64, tpu.core_type = #tpu.core_type<tc>} {
    %c0 = arith.constant 0 : index
    %c0_0 = arith.constant 0 : index
    %0 = vector.load %arg1[%c0, %c0_0] : memref<320x128xbf16, #tpu.memory_space<vmem>>, vector<4x128xbf16>
    %c16 = arith.constant 16 : index
    %c0_1 = arith.constant 0 : index
    %1 = vector.load %arg1[%c16, %c0_1] : memref<320x128xbf16, #tpu.memory_space<vmem>>, vector<32x128xbf16>
    %c48 = arith.constant 48 : index
    %c0_2 = arith.constant 0 : index
    %2 = vector.load %arg1[%c48, %c0_2] : memref<320x128xbf16, #tpu.memory_space<vmem>>, vector<32x128xbf16>
    %c80 = arith.constant 80 : index
    %c0_3 = arith.constant 0 : index
    %3 = vector.load %arg1[%c80, %c0_3] : memref<320x128xbf16, #tpu.memory_space<vmem>>, vector<4x32xbf16>
    %c0_4 = arith.constant 0 : index
    %c0_5 = arith.constant 0 : index
    %4 = vector.load %arg2[%c0_4, %c0_5] : memref<24x128xf32, #tpu.memory_space<vmem>>, vector<1x128xf32>
    %c8 = arith.constant 8 : index
    %c0_6 = arith.constant 0 : index
    %5 = vector.load %arg2[%c8, %c0_6] : memref<24x128xf32, #tpu.memory_space<vmem>>, vector<1x128xf32>
    %c16_7 = arith.constant 16 : index
    %c0_8 = arith.constant 0 : index
    %6 = vector.load %arg2[%c16_7, %c0_8] : memref<24x128xf32, #tpu.memory_space<vmem>>, vector<1x32xf32>
    %c0_9 = arith.constant 0 : index
    %c0_10 = arith.constant 0 : index
    %7 = vector.load %arg0[%c0_9, %c0_10] : memref<16x4xbf16, #tpu.memory_space<vmem>>, vector<16x4xbf16>
    %cst = arith.constant dense<0.000000e+00> : vector<16x128xf32>
    %8 = tpu.matmul %7, %0, %cst {dimension_numbers = #tpu.dot_dimension_numbers<[1], [0], [0], [1], [0, 0, 1, 1], [], []>} : vector<16x4xbf16>, vector<4x128xbf16>, vector<16x128xf32> -> vector<16x128xf32>
    %9 = vector.broadcast %4 : vector<1x128xf32> to vector<16x128xf32>
    %10 = arith.addf %8, %9 : vector<16x128xf32>
    %cst_11 = arith.constant 0.000000e+00 : f32
    %11 = vector.broadcast %cst_11 : f32 to vector<2x32xf32>
    %cst_12 = arith.constant 0.000000e+00 : f32
    %12 = vector.broadcast %cst_12 : f32 to vector<2x32xf32>
    %13 = arith.truncf %11 : vector<2x32xf32> to vector<2x32xbf16>
    %cst_13 = arith.constant dense<0.000000e+00> : vector<2x128xf32>
    %14 = tpu.matmul %13, %1, %cst_13 {dimension_numbers = #tpu.dot_dimension_numbers<[1], [0], [0], [1], [0, 0, 1, 1], [], []>} : vector<2x32xbf16>, vector<32x128xbf16>, vector<2x128xf32> -> vector<2x128xf32>
    %15 = vector.extract_strided_slice %10 {offsets = [0, 0], sizes = [2, 128], strides = [1, 1]} : vector<16x128xf32> to vector<2x128xf32>
    %16 = arith.addf %14, %15 : vector<2x128xf32>
    %17 = arith.negf %16 : vector<2x128xf32>
    %18 = math.exp %17 : vector<2x128xf32>
    %cst_14 = arith.constant 1.000000e+00 : f32
    %19 = vector.broadcast %cst_14 : f32 to vector<2x128xf32>
    %20 = arith.addf %19, %18 : vector<2x128xf32>
    %21 = arith.divf %19, %20 : vector<2x128xf32>
    %22 = vector.extract_strided_slice %21 {offsets = [0, 0], sizes = [2, 32], strides = [1, 1]} : vector<2x128xf32> to vector<2x32xf32>
    %23 = vector.extract_strided_slice %21 {offsets = [0, 32], sizes = [2, 32], strides = [1, 1]} : vector<2x128xf32> to vector<2x32xf32>
    %24 = vector.extract_strided_slice %21 {offsets = [0, 64], sizes = [2, 32], strides = [1, 1]} : vector<2x128xf32> to vector<2x32xf32>
    %cst_15 = arith.constant 2.000000e+00 : f32
    %25 = vector.broadcast %cst_15 : f32 to vector<2x32xf32>
    %26 = arith.mulf %25, %24 : vector<2x32xf32>
    %cst_16 = arith.constant 1.000000e+00 : f32
    %27 = vector.broadcast %cst_16 : f32 to vector<2x32xf32>
    %28 = arith.subf %26, %27 : vector<2x32xf32>
    %29 = vector.extract_strided_slice %21 {offsets = [0, 96], sizes = [2, 32], strides = [1, 1]} : vector<2x128xf32> to vector<2x32xf32>
    %30 = arith.mulf %23, %12 : vector<2x32xf32>
    %31 = arith.mulf %22, %28 : vector<2x32xf32>
    %32 = arith.addf %30, %31 : vector<2x32xf32>
    %33 = math.tanh %32 : vector<2x32xf32>
    %34 = arith.mulf %29, %33 : vector<2x32xf32>
    %35 = arith.truncf %34 : vector<2x32xf32> to vector<2x32xbf16>
    %cst_17 = arith.constant dense<0.000000e+00> : vector<2x128xf32>
    %36 = tpu.matmul %35, %1, %cst_17 {dimension_numbers = #tpu.dot_dimension_numbers<[1], [0], [0], [1], [0, 0, 1, 1], [], []>} : vector<2x32xbf16>, vector<32x128xbf16>, vector<2x128xf32> -> vector<2x128xf32>
    %37 = vector.extract_strided_slice %10 {offsets = [2, 0], sizes = [2, 128], strides = [1, 1]} : vector<16x128xf32> to vector<2x128xf32>
    %38 = arith.addf %36, %37 : vector<2x128xf32>
    %39 = arith.negf %38 : vector<2x128xf32>
    %40 = math.exp %39 : vector<2x128xf32>
    %cst_18 = arith.constant 1.000000e+00 : f32
    %41 = vector.broadcast %cst_18 : f32 to vector<2x128xf32>
    %42 = arith.addf %41, %40 : vector<2x128xf32>
    %43 = arith.divf %41, %42 : vector<2x128xf32>
    %44 = vector.extract_strided_slice %43 {offsets = [0, 0], sizes = [2, 32], strides = [1, 1]} : vector<2x128xf32> to vector<2x32xf32>
    %45 = vector.extract_strided_slice %43 {offsets = [0, 32], sizes = [2, 32], strides = [1, 1]} : vector<2x128xf32> to vector<2x32xf32>
    %46 = vector.extract_strided_slice %43 {offsets = [0, 64], sizes = [2, 32], strides = [1, 1]} : vector<2x128xf32> to vector<2x32xf32>
    %cst_19 = arith.constant 2.000000e+00 : f32
    %47 = vector.broadcast %cst_19 : f32 to vector<2x32xf32>
    %48 = arith.mulf %47, %46 : vector<2x32xf32>
    %cst_20 = arith.constant 1.000000e+00 : f32
    %49 = vector.broadcast %cst_20 : f32 to vector<2x32xf32>
    %50 = arith.subf %48, %49 : vector<2x32xf32>
    %51 = vector.extract_strided_slice %43 {offsets = [0, 96], sizes = [2, 32], strides = [1, 1]} : vector<2x128xf32> to vector<2x32xf32>
    %52 = arith.mulf %45, %32 : vector<2x32xf32>
    %53 = arith.mulf %44, %50 : vector<2x32xf32>
    %54 = arith.addf %52, %53 : vector<2x32xf32>
    %55 = math.tanh %54 : vector<2x32xf32>
    %56 = arith.mulf %51, %55 : vector<2x32xf32>
    %57 = arith.truncf %56 : vector<2x32xf32> to vector<2x32xbf16>
    %cst_21 = arith.constant dense<0.000000e+00> : vector<2x128xf32>
    %58 = tpu.matmul %57, %1, %cst_21 {dimension_numbers = #tpu.dot_dimension_numbers<[1], [0], [0], [1], [0, 0, 1, 1], [], []>} : vector<2x32xbf16>, vector<32x128xbf16>, vector<2x128xf32> -> vector<2x128xf32>
    %59 = vector.extract_strided_slice %10 {offsets = [4, 0], sizes = [2, 128], strides = [1, 1]} : vector<16x128xf32> to vector<2x128xf32>
    %60 = arith.addf %58, %59 : vector<2x128xf32>
    %61 = arith.negf %60 : vector<2x128xf32>
    %62 = math.exp %61 : vector<2x128xf32>
    %cst_22 = arith.constant 1.000000e+00 : f32
    %63 = vector.broadcast %cst_22 : f32 to vector<2x128xf32>
    %64 = arith.addf %63, %62 : vector<2x128xf32>
    %65 = arith.divf %63, %64 : vector<2x128xf32>
    %66 = vector.extract_strided_slice %65 {offsets = [0, 0], sizes = [2, 32], strides = [1, 1]} : vector<2x128xf32> to vector<2x32xf32>
    %67 = vector.extract_strided_slice %65 {offsets = [0, 32], sizes = [2, 32], strides = [1, 1]} : vector<2x128xf32> to vector<2x32xf32>
    %68 = vector.extract_strided_slice %65 {offsets = [0, 64], sizes = [2, 32], strides = [1, 1]} : vector<2x128xf32> to vector<2x32xf32>
    %cst_23 = arith.constant 2.000000e+00 : f32
    %69 = vector.broadcast %cst_23 : f32 to vector<2x32xf32>
    %70 = arith.mulf %69, %68 : vector<2x32xf32>
    %cst_24 = arith.constant 1.000000e+00 : f32
    %71 = vector.broadcast %cst_24 : f32 to vector<2x32xf32>
    %72 = arith.subf %70, %71 : vector<2x32xf32>
    %73 = vector.extract_strided_slice %65 {offsets = [0, 96], sizes = [2, 32], strides = [1, 1]} : vector<2x128xf32> to vector<2x32xf32>
    %74 = arith.mulf %67, %54 : vector<2x32xf32>
    %75 = arith.mulf %66, %72 : vector<2x32xf32>
    %76 = arith.addf %74, %75 : vector<2x32xf32>
    %77 = math.tanh %76 : vector<2x32xf32>
    %78 = arith.mulf %73, %77 : vector<2x32xf32>
    %79 = arith.truncf %78 : vector<2x32xf32> to vector<2x32xbf16>
    %cst_25 = arith.constant dense<0.000000e+00> : vector<2x128xf32>
    %80 = tpu.matmul %79, %1, %cst_25 {dimension_numbers = #tpu.dot_dimension_numbers<[1], [0], [0], [1], [0, 0, 1, 1], [], []>} : vector<2x32xbf16>, vector<32x128xbf16>, vector<2x128xf32> -> vector<2x128xf32>
    %81 = vector.extract_strided_slice %10 {offsets = [6, 0], sizes = [2, 128], strides = [1, 1]} : vector<16x128xf32> to vector<2x128xf32>
    %82 = arith.addf %80, %81 : vector<2x128xf32>
    %83 = arith.negf %82 : vector<2x128xf32>
    %84 = math.exp %83 : vector<2x128xf32>
    %cst_26 = arith.constant 1.000000e+00 : f32
    %85 = vector.broadcast %cst_26 : f32 to vector<2x128xf32>
    %86 = arith.addf %85, %84 : vector<2x128xf32>
    %87 = arith.divf %85, %86 : vector<2x128xf32>
    %88 = vector.extract_strided_slice %87 {offsets = [0, 0], sizes = [2, 32], strides = [1, 1]} : vector<2x128xf32> to vector<2x32xf32>
    %89 = vector.extract_strided_slice %87 {offsets = [0, 32], sizes = [2, 32], strides = [1, 1]} : vector<2x128xf32> to vector<2x32xf32>
    %90 = vector.extract_strided_slice %87 {offsets = [0, 64], sizes = [2, 32], strides = [1, 1]} : vector<2x128xf32> to vector<2x32xf32>
    %cst_27 = arith.constant 2.000000e+00 : f32
    %91 = vector.broadcast %cst_27 : f32 to vector<2x32xf32>
    %92 = arith.mulf %91, %90 : vector<2x32xf32>
    %cst_28 = arith.constant 1.000000e+00 : f32
    %93 = vector.broadcast %cst_28 : f32 to vector<2x32xf32>
    %94 = arith.subf %92, %93 : vector<2x32xf32>
    %95 = vector.extract_strided_slice %87 {offsets = [0, 96], sizes = [2, 32], strides = [1, 1]} : vector<2x128xf32> to vector<2x32xf32>
    %96 = arith.mulf %89, %76 : vector<2x32xf32>
    %97 = arith.mulf %88, %94 : vector<2x32xf32>
    %98 = arith.addf %96, %97 : vector<2x32xf32>
    %99 = math.tanh %98 : vector<2x32xf32>
    %100 = arith.mulf %95, %99 : vector<2x32xf32>
    %101 = arith.truncf %100 : vector<2x32xf32> to vector<2x32xbf16>
    %cst_29 = arith.constant dense<0.000000e+00> : vector<2x128xf32>
    %102 = tpu.matmul %101, %1, %cst_29 {dimension_numbers = #tpu.dot_dimension_numbers<[1], [0], [0], [1], [0, 0, 1, 1], [], []>} : vector<2x32xbf16>, vector<32x128xbf16>, vector<2x128xf32> -> vector<2x128xf32>
    %103 = vector.extract_strided_slice %10 {offsets = [8, 0], sizes = [2, 128], strides = [1, 1]} : vector<16x128xf32> to vector<2x128xf32>
    %104 = arith.addf %102, %103 : vector<2x128xf32>
    %105 = arith.negf %104 : vector<2x128xf32>
    %106 = math.exp %105 : vector<2x128xf32>
    %cst_30 = arith.constant 1.000000e+00 : f32
    %107 = vector.broadcast %cst_30 : f32 to vector<2x128xf32>
    %108 = arith.addf %107, %106 : vector<2x128xf32>
    %109 = arith.divf %107, %108 : vector<2x128xf32>
    %110 = vector.extract_strided_slice %109 {offsets = [0, 0], sizes = [2, 32], strides = [1, 1]} : vector<2x128xf32> to vector<2x32xf32>
    %111 = vector.extract_strided_slice %109 {offsets = [0, 32], sizes = [2, 32], strides = [1, 1]} : vector<2x128xf32> to vector<2x32xf32>
    %112 = vector.extract_strided_slice %109 {offsets = [0, 64], sizes = [2, 32], strides = [1, 1]} : vector<2x128xf32> to vector<2x32xf32>
    %cst_31 = arith.constant 2.000000e+00 : f32
    %113 = vector.broadcast %cst_31 : f32 to vector<2x32xf32>
    %114 = arith.mulf %113, %112 : vector<2x32xf32>
    %cst_32 = arith.constant 1.000000e+00 : f32
    %115 = vector.broadcast %cst_32 : f32 to vector<2x32xf32>
    %116 = arith.subf %114, %115 : vector<2x32xf32>
    %117 = vector.extract_strided_slice %109 {offsets = [0, 96], sizes = [2, 32], strides = [1, 1]} : vector<2x128xf32> to vector<2x32xf32>
    %118 = arith.mulf %111, %98 : vector<2x32xf32>
    %119 = arith.mulf %110, %116 : vector<2x32xf32>
    %120 = arith.addf %118, %119 : vector<2x32xf32>
    %121 = math.tanh %120 : vector<2x32xf32>
    %122 = arith.mulf %117, %121 : vector<2x32xf32>
    %123 = arith.truncf %122 : vector<2x32xf32> to vector<2x32xbf16>
    %cst_33 = arith.constant dense<0.000000e+00> : vector<2x128xf32>
    %124 = tpu.matmul %123, %1, %cst_33 {dimension_numbers = #tpu.dot_dimension_numbers<[1], [0], [0], [1], [0, 0, 1, 1], [], []>} : vector<2x32xbf16>, vector<32x128xbf16>, vector<2x128xf32> -> vector<2x128xf32>
    %125 = vector.extract_strided_slice %10 {offsets = [10, 0], sizes = [2, 128], strides = [1, 1]} : vector<16x128xf32> to vector<2x128xf32>
    %126 = arith.addf %124, %125 : vector<2x128xf32>
    %127 = arith.negf %126 : vector<2x128xf32>
    %128 = math.exp %127 : vector<2x128xf32>
    %cst_34 = arith.constant 1.000000e+00 : f32
    %129 = vector.broadcast %cst_34 : f32 to vector<2x128xf32>
    %130 = arith.addf %129, %128 : vector<2x128xf32>
    %131 = arith.divf %129, %130 : vector<2x128xf32>
    %132 = vector.extract_strided_slice %131 {offsets = [0, 0], sizes = [2, 32], strides = [1, 1]} : vector<2x128xf32> to vector<2x32xf32>
    %133 = vector.extract_strided_slice %131 {offsets = [0, 32], sizes = [2, 32], strides = [1, 1]} : vector<2x128xf32> to vector<2x32xf32>
    %134 = vector.extract_strided_slice %131 {offsets = [0, 64], sizes = [2, 32], strides = [1, 1]} : vector<2x128xf32> to vector<2x32xf32>
    %cst_35 = arith.constant 2.000000e+00 : f32
    %135 = vector.broadcast %cst_35 : f32 to vector<2x32xf32>
    %136 = arith.mulf %135, %134 : vector<2x32xf32>
    %cst_36 = arith.constant 1.000000e+00 : f32
    %137 = vector.broadcast %cst_36 : f32 to vector<2x32xf32>
    %138 = arith.subf %136, %137 : vector<2x32xf32>
    %139 = vector.extract_strided_slice %131 {offsets = [0, 96], sizes = [2, 32], strides = [1, 1]} : vector<2x128xf32> to vector<2x32xf32>
    %140 = arith.mulf %133, %120 : vector<2x32xf32>
    %141 = arith.mulf %132, %138 : vector<2x32xf32>
    %142 = arith.addf %140, %141 : vector<2x32xf32>
    %143 = math.tanh %142 : vector<2x32xf32>
    %144 = arith.mulf %139, %143 : vector<2x32xf32>
    %145 = arith.truncf %144 : vector<2x32xf32> to vector<2x32xbf16>
    %cst_37 = arith.constant dense<0.000000e+00> : vector<2x128xf32>
    %146 = tpu.matmul %145, %1, %cst_37 {dimension_numbers = #tpu.dot_dimension_numbers<[1], [0], [0], [1], [0, 0, 1, 1], [], []>} : vector<2x32xbf16>, vector<32x128xbf16>, vector<2x128xf32> -> vector<2x128xf32>
    %147 = vector.extract_strided_slice %10 {offsets = [12, 0], sizes = [2, 128], strides = [1, 1]} : vector<16x128xf32> to vector<2x128xf32>
    %148 = arith.addf %146, %147 : vector<2x128xf32>
    %149 = arith.negf %148 : vector<2x128xf32>
    %150 = math.exp %149 : vector<2x128xf32>
    %cst_38 = arith.constant 1.000000e+00 : f32
    %151 = vector.broadcast %cst_38 : f32 to vector<2x128xf32>
    %152 = arith.addf %151, %150 : vector<2x128xf32>
    %153 = arith.divf %151, %152 : vector<2x128xf32>
    %154 = vector.extract_strided_slice %153 {offsets = [0, 0], sizes = [2, 32], strides = [1, 1]} : vector<2x128xf32> to vector<2x32xf32>
    %155 = vector.extract_strided_slice %153 {offsets = [0, 32], sizes = [2, 32], strides = [1, 1]} : vector<2x128xf32> to vector<2x32xf32>
    %156 = vector.extract_strided_slice %153 {offsets = [0, 64], sizes = [2, 32], strides = [1, 1]} : vector<2x128xf32> to vector<2x32xf32>
    %cst_39 = arith.constant 2.000000e+00 : f32
    %157 = vector.broadcast %cst_39 : f32 to vector<2x32xf32>
    %158 = arith.mulf %157, %156 : vector<2x32xf32>
    %cst_40 = arith.constant 1.000000e+00 : f32
    %159 = vector.broadcast %cst_40 : f32 to vector<2x32xf32>
    %160 = arith.subf %158, %159 : vector<2x32xf32>
    %161 = vector.extract_strided_slice %153 {offsets = [0, 96], sizes = [2, 32], strides = [1, 1]} : vector<2x128xf32> to vector<2x32xf32>
    %162 = arith.mulf %155, %142 : vector<2x32xf32>
    %163 = arith.mulf %154, %160 : vector<2x32xf32>
    %164 = arith.addf %162, %163 : vector<2x32xf32>
    %165 = math.tanh %164 : vector<2x32xf32>
    %166 = arith.mulf %161, %165 : vector<2x32xf32>
    %167 = arith.truncf %166 : vector<2x32xf32> to vector<2x32xbf16>
    %cst_41 = arith.constant dense<0.000000e+00> : vector<2x128xf32>
    %168 = tpu.matmul %167, %1, %cst_41 {dimension_numbers = #tpu.dot_dimension_numbers<[1], [0], [0], [1], [0, 0, 1, 1], [], []>} : vector<2x32xbf16>, vector<32x128xbf16>, vector<2x128xf32> -> vector<2x128xf32>
    %169 = vector.extract_strided_slice %10 {offsets = [14, 0], sizes = [2, 128], strides = [1, 1]} : vector<16x128xf32> to vector<2x128xf32>
    %170 = arith.addf %168, %169 : vector<2x128xf32>
    %171 = arith.negf %170 : vector<2x128xf32>
    %172 = math.exp %171 : vector<2x128xf32>
    %cst_42 = arith.constant 1.000000e+00 : f32
    %173 = vector.broadcast %cst_42 : f32 to vector<2x128xf32>
    %174 = arith.addf %173, %172 : vector<2x128xf32>
    %175 = arith.divf %173, %174 : vector<2x128xf32>
    %176 = vector.extract_strided_slice %175 {offsets = [0, 0], sizes = [2, 32], strides = [1, 1]} : vector<2x128xf32> to vector<2x32xf32>
    %177 = vector.extract_strided_slice %175 {offsets = [0, 32], sizes = [2, 32], strides = [1, 1]} : vector<2x128xf32> to vector<2x32xf32>
    %178 = vector.extract_strided_slice %175 {offsets = [0, 64], sizes = [2, 32], strides = [1, 1]} : vector<2x128xf32> to vector<2x32xf32>
    %cst_43 = arith.constant 2.000000e+00 : f32
    %179 = vector.broadcast %cst_43 : f32 to vector<2x32xf32>
    %180 = arith.mulf %179, %178 : vector<2x32xf32>
    %cst_44 = arith.constant 1.000000e+00 : f32
    %181 = vector.broadcast %cst_44 : f32 to vector<2x32xf32>
    %182 = arith.subf %180, %181 : vector<2x32xf32>
    %183 = vector.extract_strided_slice %175 {offsets = [0, 96], sizes = [2, 32], strides = [1, 1]} : vector<2x128xf32> to vector<2x32xf32>
    %184 = arith.mulf %177, %164 : vector<2x32xf32>
    %185 = arith.mulf %176, %182 : vector<2x32xf32>
    %186 = arith.addf %184, %185 : vector<2x32xf32>
    %187 = math.tanh %186 : vector<2x32xf32>
    %188 = arith.mulf %183, %187 : vector<2x32xf32>
    %189 = vector.extract_strided_slice %7 {offsets = [14, 0], sizes = [2, 4], strides = [1, 1]} : vector<16x4xbf16> to vector<2x4xbf16>
    %cst_45 = arith.constant dense<0.000000e+00> : vector<2x32xf32>
    %190 = tpu.matmul %189, %3, %cst_45 {dimension_numbers = #tpu.dot_dimension_numbers<[1], [0], [0], [1], [0, 0, 1, 1], [], []>} : vector<2x4xbf16>, vector<4x32xbf16>, vector<2x32xf32> -> vector<2x32xf32>
    %191 = vector.broadcast %6 : vector<1x32xf32> to vector<2x32xf32>
    %192 = arith.addf %190, %191 : vector<2x32xf32>
    %193 = arith.truncf %188 : vector<2x32xf32> to vector<2x32xbf16>
    %c96 = arith.constant 96 : index
    %c0_46 = arith.constant 0 : index
    %194 = vector.load %arg1[%c96, %c0_46] : memref<320x128xbf16, #tpu.memory_space<vmem>>, vector<32x32xbf16>
    %cst_47 = arith.constant dense<0.000000e+00> : vector<2x32xf32>
    %195 = tpu.matmul %193, %194, %cst_47 {dimension_numbers = #tpu.dot_dimension_numbers<[1], [0], [0], [1], [0, 0, 1, 1], [], []>} : vector<2x32xbf16>, vector<32x32xbf16>, vector<2x32xf32> -> vector<2x32xf32>
    %196 = arith.addf %192, %195 : vector<2x32xf32>
    %cst_48 = arith.constant dense<0.000000e+00> : vector<2x128xf32>
    %197 = tpu.matmul %193, %2, %cst_48 {dimension_numbers = #tpu.dot_dimension_numbers<[1], [0], [0], [1], [0, 0, 1, 1], [], []>} : vector<2x32xbf16>, vector<32x128xbf16>, vector<2x128xf32> -> vector<2x128xf32>
    %198 = vector.broadcast %5 : vector<1x128xf32> to vector<2x128xf32>
    %199 = arith.addf %197, %198 : vector<2x128xf32>
    %200 = arith.negf %199 : vector<2x128xf32>
    %201 = math.exp %200 : vector<2x128xf32>
    %cst_49 = arith.constant 1.000000e+00 : f32
    %202 = vector.broadcast %cst_49 : f32 to vector<2x128xf32>
    %203 = arith.addf %202, %201 : vector<2x128xf32>
    %204 = arith.divf %202, %203 : vector<2x128xf32>
    %205 = vector.extract_strided_slice %204 {offsets = [0, 0], sizes = [2, 32], strides = [1, 1]} : vector<2x128xf32> to vector<2x32xf32>
    %206 = vector.extract_strided_slice %204 {offsets = [0, 32], sizes = [2, 32], strides = [1, 1]} : vector<2x128xf32> to vector<2x32xf32>
    %207 = vector.extract_strided_slice %204 {offsets = [0, 64], sizes = [2, 32], strides = [1, 1]} : vector<2x128xf32> to vector<2x32xf32>
    %cst_50 = arith.constant 2.000000e+00 : f32
    %208 = vector.broadcast %cst_50 : f32 to vector<2x32xf32>
    %209 = arith.mulf %208, %207 : vector<2x32xf32>
    %cst_51 = arith.constant 1.000000e+00 : f32
    %210 = vector.broadcast %cst_51 : f32 to vector<2x32xf32>
    %211 = arith.subf %209, %210 : vector<2x32xf32>
    %212 = vector.extract_strided_slice %204 {offsets = [0, 96], sizes = [2, 32], strides = [1, 1]} : vector<2x128xf32> to vector<2x32xf32>
    %213 = arith.mulf %206, %186 : vector<2x32xf32>
    %214 = arith.mulf %205, %211 : vector<2x32xf32>
    %215 = arith.addf %213, %214 : vector<2x32xf32>
    %216 = math.tanh %215 : vector<2x32xf32>
    %217 = arith.mulf %212, %216 : vector<2x32xf32>
    %218 = arith.truncf %217 : vector<2x32xf32> to vector<2x32xbf16>
    %c128 = arith.constant 128 : index
    %c0_52 = arith.constant 0 : index
    %219 = vector.load %arg1[%c128, %c0_52] : memref<320x128xbf16, #tpu.memory_space<vmem>>, vector<32x32xbf16>
    %cst_53 = arith.constant dense<0.000000e+00> : vector<2x32xf32>
    %220 = tpu.matmul %218, %219, %cst_53 {dimension_numbers = #tpu.dot_dimension_numbers<[1], [0], [0], [1], [0, 0, 1, 1], [], []>} : vector<2x32xbf16>, vector<32x32xbf16>, vector<2x32xf32> -> vector<2x32xf32>
    %221 = arith.addf %196, %220 : vector<2x32xf32>
    %cst_54 = arith.constant dense<0.000000e+00> : vector<2x128xf32>
    %222 = tpu.matmul %218, %2, %cst_54 {dimension_numbers = #tpu.dot_dimension_numbers<[1], [0], [0], [1], [0, 0, 1, 1], [], []>} : vector<2x32xbf16>, vector<32x128xbf16>, vector<2x128xf32> -> vector<2x128xf32>
    %223 = vector.broadcast %5 : vector<1x128xf32> to vector<2x128xf32>
    %224 = arith.addf %222, %223 : vector<2x128xf32>
    %225 = arith.negf %224 : vector<2x128xf32>
    %226 = math.exp %225 : vector<2x128xf32>
    %cst_55 = arith.constant 1.000000e+00 : f32
    %227 = vector.broadcast %cst_55 : f32 to vector<2x128xf32>
    %228 = arith.addf %227, %226 : vector<2x128xf32>
    %229 = arith.divf %227, %228 : vector<2x128xf32>
    %230 = vector.extract_strided_slice %229 {offsets = [0, 0], sizes = [2, 32], strides = [1, 1]} : vector<2x128xf32> to vector<2x32xf32>
    %231 = vector.extract_strided_slice %229 {offsets = [0, 32], sizes = [2, 32], strides = [1, 1]} : vector<2x128xf32> to vector<2x32xf32>
    %232 = vector.extract_strided_slice %229 {offsets = [0, 64], sizes = [2, 32], strides = [1, 1]} : vector<2x128xf32> to vector<2x32xf32>
    %cst_56 = arith.constant 2.000000e+00 : f32
    %233 = vector.broadcast %cst_56 : f32 to vector<2x32xf32>
    %234 = arith.mulf %233, %232 : vector<2x32xf32>
    %cst_57 = arith.constant 1.000000e+00 : f32
    %235 = vector.broadcast %cst_57 : f32 to vector<2x32xf32>
    %236 = arith.subf %234, %235 : vector<2x32xf32>
    %237 = vector.extract_strided_slice %229 {offsets = [0, 96], sizes = [2, 32], strides = [1, 1]} : vector<2x128xf32> to vector<2x32xf32>
    %238 = arith.mulf %231, %215 : vector<2x32xf32>
    %239 = arith.mulf %230, %236 : vector<2x32xf32>
    %240 = arith.addf %238, %239 : vector<2x32xf32>
    %241 = math.tanh %240 : vector<2x32xf32>
    %242 = arith.mulf %237, %241 : vector<2x32xf32>
    %243 = arith.truncf %242 : vector<2x32xf32> to vector<2x32xbf16>
    %c160 = arith.constant 160 : index
    %c0_58 = arith.constant 0 : index
    %244 = vector.load %arg1[%c160, %c0_58] : memref<320x128xbf16, #tpu.memory_space<vmem>>, vector<32x32xbf16>
    %cst_59 = arith.constant dense<0.000000e+00> : vector<2x32xf32>
    %245 = tpu.matmul %243, %244, %cst_59 {dimension_numbers = #tpu.dot_dimension_numbers<[1], [0], [0], [1], [0, 0, 1, 1], [], []>} : vector<2x32xbf16>, vector<32x32xbf16>, vector<2x32xf32> -> vector<2x32xf32>
    %246 = arith.addf %221, %245 : vector<2x32xf32>
    %cst_60 = arith.constant dense<0.000000e+00> : vector<2x128xf32>
    %247 = tpu.matmul %243, %2, %cst_60 {dimension_numbers = #tpu.dot_dimension_numbers<[1], [0], [0], [1], [0, 0, 1, 1], [], []>} : vector<2x32xbf16>, vector<32x128xbf16>, vector<2x128xf32> -> vector<2x128xf32>
    %248 = vector.broadcast %5 : vector<1x128xf32> to vector<2x128xf32>
    %249 = arith.addf %247, %248 : vector<2x128xf32>
    %250 = arith.negf %249 : vector<2x128xf32>
    %251 = math.exp %250 : vector<2x128xf32>
    %cst_61 = arith.constant 1.000000e+00 : f32
    %252 = vector.broadcast %cst_61 : f32 to vector<2x128xf32>
    %253 = arith.addf %252, %251 : vector<2x128xf32>
    %254 = arith.divf %252, %253 : vector<2x128xf32>
    %255 = vector.extract_strided_slice %254 {offsets = [0, 0], sizes = [2, 32], strides = [1, 1]} : vector<2x128xf32> to vector<2x32xf32>
    %256 = vector.extract_strided_slice %254 {offsets = [0, 32], sizes = [2, 32], strides = [1, 1]} : vector<2x128xf32> to vector<2x32xf32>
    %257 = vector.extract_strided_slice %254 {offsets = [0, 64], sizes = [2, 32], strides = [1, 1]} : vector<2x128xf32> to vector<2x32xf32>
    %cst_62 = arith.constant 2.000000e+00 : f32
    %258 = vector.broadcast %cst_62 : f32 to vector<2x32xf32>
    %259 = arith.mulf %258, %257 : vector<2x32xf32>
    %cst_63 = arith.constant 1.000000e+00 : f32
    %260 = vector.broadcast %cst_63 : f32 to vector<2x32xf32>
    %261 = arith.subf %259, %260 : vector<2x32xf32>
    %262 = vector.extract_strided_slice %254 {offsets = [0, 96], sizes = [2, 32], strides = [1, 1]} : vector<2x128xf32> to vector<2x32xf32>
    %263 = arith.mulf %256, %240 : vector<2x32xf32>
    %264 = arith.mulf %255, %261 : vector<2x32xf32>
    %265 = arith.addf %263, %264 : vector<2x32xf32>
    %266 = math.tanh %265 : vector<2x32xf32>
    %267 = arith.mulf %262, %266 : vector<2x32xf32>
    %268 = arith.truncf %267 : vector<2x32xf32> to vector<2x32xbf16>
    %c192 = arith.constant 192 : index
    %c0_64 = arith.constant 0 : index
    %269 = vector.load %arg1[%c192, %c0_64] : memref<320x128xbf16, #tpu.memory_space<vmem>>, vector<32x32xbf16>
    %cst_65 = arith.constant dense<0.000000e+00> : vector<2x32xf32>
    %270 = tpu.matmul %268, %269, %cst_65 {dimension_numbers = #tpu.dot_dimension_numbers<[1], [0], [0], [1], [0, 0, 1, 1], [], []>} : vector<2x32xbf16>, vector<32x32xbf16>, vector<2x32xf32> -> vector<2x32xf32>
    %271 = arith.addf %246, %270 : vector<2x32xf32>
    %cst_66 = arith.constant dense<0.000000e+00> : vector<2x128xf32>
    %272 = tpu.matmul %268, %2, %cst_66 {dimension_numbers = #tpu.dot_dimension_numbers<[1], [0], [0], [1], [0, 0, 1, 1], [], []>} : vector<2x32xbf16>, vector<32x128xbf16>, vector<2x128xf32> -> vector<2x128xf32>
    %273 = vector.broadcast %5 : vector<1x128xf32> to vector<2x128xf32>
    %274 = arith.addf %272, %273 : vector<2x128xf32>
    %275 = arith.negf %274 : vector<2x128xf32>
    %276 = math.exp %275 : vector<2x128xf32>
    %cst_67 = arith.constant 1.000000e+00 : f32
    %277 = vector.broadcast %cst_67 : f32 to vector<2x128xf32>
    %278 = arith.addf %277, %276 : vector<2x128xf32>
    %279 = arith.divf %277, %278 : vector<2x128xf32>
    %280 = vector.extract_strided_slice %279 {offsets = [0, 0], sizes = [2, 32], strides = [1, 1]} : vector<2x128xf32> to vector<2x32xf32>
    %281 = vector.extract_strided_slice %279 {offsets = [0, 32], sizes = [2, 32], strides = [1, 1]} : vector<2x128xf32> to vector<2x32xf32>
    %282 = vector.extract_strided_slice %279 {offsets = [0, 64], sizes = [2, 32], strides = [1, 1]} : vector<2x128xf32> to vector<2x32xf32>
    %cst_68 = arith.constant 2.000000e+00 : f32
    %283 = vector.broadcast %cst_68 : f32 to vector<2x32xf32>
    %284 = arith.mulf %283, %282 : vector<2x32xf32>
    %cst_69 = arith.constant 1.000000e+00 : f32
    %285 = vector.broadcast %cst_69 : f32 to vector<2x32xf32>
    %286 = arith.subf %284, %285 : vector<2x32xf32>
    %287 = vector.extract_strided_slice %279 {offsets = [0, 96], sizes = [2, 32], strides = [1, 1]} : vector<2x128xf32> to vector<2x32xf32>
    %288 = arith.mulf %281, %265 : vector<2x32xf32>
    %289 = arith.mulf %280, %286 : vector<2x32xf32>
    %290 = arith.addf %288, %289 : vector<2x32xf32>
    %291 = math.tanh %290 : vector<2x32xf32>
    %292 = arith.mulf %287, %291 : vector<2x32xf32>
    %293 = arith.truncf %292 : vector<2x32xf32> to vector<2x32xbf16>
    %c224 = arith.constant 224 : index
    %c0_70 = arith.constant 0 : index
    %294 = vector.load %arg1[%c224, %c0_70] : memref<320x128xbf16, #tpu.memory_space<vmem>>, vector<32x32xbf16>
    %cst_71 = arith.constant dense<0.000000e+00> : vector<2x32xf32>
    %295 = tpu.matmul %293, %294, %cst_71 {dimension_numbers = #tpu.dot_dimension_numbers<[1], [0], [0], [1], [0, 0, 1, 1], [], []>} : vector<2x32xbf16>, vector<32x32xbf16>, vector<2x32xf32> -> vector<2x32xf32>
    %296 = arith.addf %271, %295 : vector<2x32xf32>
    %cst_72 = arith.constant dense<0.000000e+00> : vector<2x128xf32>
    %297 = tpu.matmul %293, %2, %cst_72 {dimension_numbers = #tpu.dot_dimension_numbers<[1], [0], [0], [1], [0, 0, 1, 1], [], []>} : vector<2x32xbf16>, vector<32x128xbf16>, vector<2x128xf32> -> vector<2x128xf32>
    %298 = vector.broadcast %5 : vector<1x128xf32> to vector<2x128xf32>
    %299 = arith.addf %297, %298 : vector<2x128xf32>
    %300 = arith.negf %299 : vector<2x128xf32>
    %301 = math.exp %300 : vector<2x128xf32>
    %cst_73 = arith.constant 1.000000e+00 : f32
    %302 = vector.broadcast %cst_73 : f32 to vector<2x128xf32>
    %303 = arith.addf %302, %301 : vector<2x128xf32>
    %304 = arith.divf %302, %303 : vector<2x128xf32>
    %305 = vector.extract_strided_slice %304 {offsets = [0, 0], sizes = [2, 32], strides = [1, 1]} : vector<2x128xf32> to vector<2x32xf32>
    %306 = vector.extract_strided_slice %304 {offsets = [0, 32], sizes = [2, 32], strides = [1, 1]} : vector<2x128xf32> to vector<2x32xf32>
    %307 = vector.extract_strided_slice %304 {offsets = [0, 64], sizes = [2, 32], strides = [1, 1]} : vector<2x128xf32> to vector<2x32xf32>
    %cst_74 = arith.constant 2.000000e+00 : f32
    %308 = vector.broadcast %cst_74 : f32 to vector<2x32xf32>
    %309 = arith.mulf %308, %307 : vector<2x32xf32>
    %cst_75 = arith.constant 1.000000e+00 : f32
    %310 = vector.broadcast %cst_75 : f32 to vector<2x32xf32>
    %311 = arith.subf %309, %310 : vector<2x32xf32>
    %312 = vector.extract_strided_slice %304 {offsets = [0, 96], sizes = [2, 32], strides = [1, 1]} : vector<2x128xf32> to vector<2x32xf32>
    %313 = arith.mulf %306, %290 : vector<2x32xf32>
    %314 = arith.mulf %305, %311 : vector<2x32xf32>
    %315 = arith.addf %313, %314 : vector<2x32xf32>
    %316 = math.tanh %315 : vector<2x32xf32>
    %317 = arith.mulf %312, %316 : vector<2x32xf32>
    %318 = arith.truncf %317 : vector<2x32xf32> to vector<2x32xbf16>
    %c256 = arith.constant 256 : index
    %c0_76 = arith.constant 0 : index
    %319 = vector.load %arg1[%c256, %c0_76] : memref<320x128xbf16, #tpu.memory_space<vmem>>, vector<32x32xbf16>
    %cst_77 = arith.constant dense<0.000000e+00> : vector<2x32xf32>
    %320 = tpu.matmul %318, %319, %cst_77 {dimension_numbers = #tpu.dot_dimension_numbers<[1], [0], [0], [1], [0, 0, 1, 1], [], []>} : vector<2x32xbf16>, vector<32x32xbf16>, vector<2x32xf32> -> vector<2x32xf32>
    %321 = arith.addf %296, %320 : vector<2x32xf32>
    %cst_78 = arith.constant dense<0.000000e+00> : vector<2x128xf32>
    %322 = tpu.matmul %318, %2, %cst_78 {dimension_numbers = #tpu.dot_dimension_numbers<[1], [0], [0], [1], [0, 0, 1, 1], [], []>} : vector<2x32xbf16>, vector<32x128xbf16>, vector<2x128xf32> -> vector<2x128xf32>
    %323 = vector.broadcast %5 : vector<1x128xf32> to vector<2x128xf32>
    %324 = arith.addf %322, %323 : vector<2x128xf32>
    %325 = arith.negf %324 : vector<2x128xf32>
    %326 = math.exp %325 : vector<2x128xf32>
    %cst_79 = arith.constant 1.000000e+00 : f32
    %327 = vector.broadcast %cst_79 : f32 to vector<2x128xf32>
    %328 = arith.addf %327, %326 : vector<2x128xf32>
    %329 = arith.divf %327, %328 : vector<2x128xf32>
    %330 = vector.extract_strided_slice %329 {offsets = [0, 0], sizes = [2, 32], strides = [1, 1]} : vector<2x128xf32> to vector<2x32xf32>
    %331 = vector.extract_strided_slice %329 {offsets = [0, 32], sizes = [2, 32], strides = [1, 1]} : vector<2x128xf32> to vector<2x32xf32>
    %332 = vector.extract_strided_slice %329 {offsets = [0, 64], sizes = [2, 32], strides = [1, 1]} : vector<2x128xf32> to vector<2x32xf32>
    %cst_80 = arith.constant 2.000000e+00 : f32
    %333 = vector.broadcast %cst_80 : f32 to vector<2x32xf32>
    %334 = arith.mulf %333, %332 : vector<2x32xf32>
    %cst_81 = arith.constant 1.000000e+00 : f32
    %335 = vector.broadcast %cst_81 : f32 to vector<2x32xf32>
    %336 = arith.subf %334, %335 : vector<2x32xf32>
    %337 = vector.extract_strided_slice %329 {offsets = [0, 96], sizes = [2, 32], strides = [1, 1]} : vector<2x128xf32> to vector<2x32xf32>
    %338 = arith.mulf %331, %315 : vector<2x32xf32>
    %339 = arith.mulf %330, %336 : vector<2x32xf32>
    %340 = arith.addf %338, %339 : vector<2x32xf32>
    %341 = math.tanh %340 : vector<2x32xf32>
    %342 = arith.mulf %337, %341 : vector<2x32xf32>
    %343 = arith.truncf %342 : vector<2x32xf32> to vector<2x32xbf16>
    %c288 = arith.constant 288 : index
    %c0_82 = arith.constant 0 : index
    %344 = vector.load %arg1[%c288, %c0_82] : memref<320x128xbf16, #tpu.memory_space<vmem>>, vector<32x32xbf16>
    %cst_83 = arith.constant dense<0.000000e+00> : vector<2x32xf32>
    %345 = tpu.matmul %343, %344, %cst_83 {dimension_numbers = #tpu.dot_dimension_numbers<[1], [0], [0], [1], [0, 0, 1, 1], [], []>} : vector<2x32xbf16>, vector<32x32xbf16>, vector<2x32xf32> -> vector<2x32xf32>
    %346 = arith.addf %321, %345 : vector<2x32xf32>
    %c0_84 = arith.constant 0 : index
    %c0_85 = arith.constant 0 : index
    %347 = vector.load %arg3[%c0_84, %c0_85] : memref<2x32xf32, #tpu.memory_space<vmem>>, vector<2x32xf32>
    tpu.vector_store %arg3[%c0_84, %c0_85], %346 {strides = array<i32>} : memref<2x32xf32, #tpu.memory_space<vmem>>, vector<2x32xf32>,
    return
  }
}

</mosaic_0001>

<llo_original>
// kernel: tpu_custom_call.1
$region0: #{tpu_custom_call.1}
  #allocation0 [shape = 'u32[]', space=smem, size = 0x4, offset = 0x4, fixed_abs, tag = 'smem constant byte address 0x4 - core index']
  #allocation1 [shape = 'u32[72,128]{1,0:T(1,128)}', space=vmem, size = 0x9000, scoped, tag = 'internal scratch']
  %s0 = inlined_call_operand.vmem [shape: bf16[16,4], index: 0, kind: input, shape index: {}]
  %s1 = inlined_call_operand.hbm [shape: bf16[320,128], index: 1, kind: input, shape index: {}]
  %s2 = inlined_call_operand.hbm [shape: f32[24,128], index: 2, kind: input, shape index: {}]
  %s3 = inlined_call_operand.hbm [shape: f32[2,32], index: 3, kind: output, shape index: {}]
  %s4 = sld [smem:[#allocation0]]
  $region30: #{tpu_custom_call.1} parent=0
    _
  %s6 = ssub.s32 1, %s4
  %s7 = scalar_select 0, %s6, %s4
  $region1: #{tpu_custom_call.1} parent=0
    #allocation2 [shape = 'u8[81920]{0}', space=vmem, size = 0x14000, scoped, tag = 'input window, operand 1, single buffered']
    #allocation3 [shape = 's32[1]{0}', space=sflag, size = 0x4, scoped, tag = 'scoped memory for tpu_custom_call.1']
    #allocation4 [shape = 's32[1]{0}', space=sflag, size = 0x4, scoped, tag = 'scoped memory for tpu_custom_call.1']
    #allocation5 [shape = 'u8[12288]{0}', space=vmem, size = 0x3000, scoped, tag = 'input window, operand 2, single buffered']
    #allocation6 [shape = 's32[1]{0}', space=sflag, size = 0x4, scoped, tag = 'scoped memory for tpu_custom_call.1']
    #allocation7 [shape = 'u8[1024]{0}', space=vmem, size = 0x400, scoped, tag = 'output window, operand 0, single buffered']
    %8 = vsyncpa [#allocation3], 0
    %9 = vsyncpa [#allocation6], 0
    %10 = vsyncpa [#allocation4], 0
    // Predicated region
    $region2: #{tpu_custom_call.1} parent=1 // pred_check
      _
    $region3: #{tpu_custom_call.1} parent=1 // pred_check_branch
      %12 = sbr.rel (0) target = $region5
    $region4: #{tpu_custom_call.1} parent=1 // pred_region
      _
    $region5: #{tpu_custom_call.1} parent=1 // pred_fallthru
      _
    // Predicated region
    $region6: #{tpu_custom_call.1} parent=1 // pred_check
      _
    $region7: #{tpu_custom_call.1} parent=1 // pred_check_branch
      %14 = sbr.rel (0) target = $region9
    $region8: #{tpu_custom_call.1} parent=1 // pred_region
      %16 = vsyncadd [#allocation3], 0
      %s17 = sshll.u32 %s1, 4
      %s18 = int_to_ptr.hbm [resolvable:$true] %s17
      %s19 = sshll.u32 [#allocation2], 4
      %s20 = int_to_ptr.vmem [resolvable:$true] %s19
      %25 = dma.hbm_to_vmem [thread:$0]  %s18, 2560, %s20, [#allocation3], 64, 64, 4
    $region9: #{tpu_custom_call.1} parent=1 // pred_fallthru
      _
    // Predicated region
    $region10: #{tpu_custom_call.1} parent=1 // pred_check
      _
    $region11: #{tpu_custom_call.1} parent=1 // pred_check_branch
      %27 = sbr.rel (0) target = $region13
    $region12: #{tpu_custom_call.1} parent=1 // pred_region
      %29 = vsyncadd [#allocation6], 0
      %s30 = sshll.u32 %s2, 4
      %s31 = int_to_ptr.hbm [resolvable:$true] %s30
      %s32 = sshll.u32 [#allocation5], 4
      %s33 = int_to_ptr.vmem [resolvable:$true] %s32
      %38 = dma.hbm_to_vmem [thread:$0]  %s31, 384, %s33, [#allocation6], 128, 128, 8
    $region13: #{tpu_custom_call.1} parent=1 // pred_fallthru
      _
    // Predicated region
    $region14: #{tpu_custom_call.1} parent=1 // pred_check
      _
    $region15: #{tpu_custom_call.1} parent=1 // pred_check_branch
      %40 = sbr.rel (0) target = $region17
    $region16: #{tpu_custom_call.1} parent=1 // pred_region
      %42 = dma.done [#allocation3], 2560
    $region17: #{tpu_custom_call.1} parent=1 // pred_fallthru
      _
    // Predicated region
    $region18: #{tpu_custom_call.1} parent=1 // pred_check
      _
    $region19: #{tpu_custom_call.1} parent=1 // pred_check_branch
      %44 = sbr.rel (0) target = $region21
    $region20: #{tpu_custom_call.1} parent=1 // pred_region
      %46 = dma.done [#allocation6], 384
    $region21: #{tpu_custom_call.1} parent=1 // pred_fallthru
      _
    %v48 = vld [vmem:[#allocation2] sm:$0x3]
    %v49 = vld [vmem:[#allocation2 + $0x8] sm:$0xf]
    %v50 = vld [vmem:[#allocation2 + $0xc] sm:$0xf]
    %v51 = vld [vmem:[#allocation2 + $0x10] sm:$0xf]
    %v52 = vld [vmem:[#allocation2 + $0x14] sm:$0xf]
    %v53 = vld [vmem:[#allocation2 + $0x18] sm:$0xf]
    %v54 = vld [vmem:[#allocation2 + $0x1c] sm:$0xf]
    %v55 = vld [vmem:[#allocation2 + $0x20] sm:$0xf]
    %v56 = vld [vmem:[#allocation2 + $0x24] sm:$0xf]
    %v57 = vld [vmem:[#allocation2 + $0x28] sm:$0x3]
    %v58 = vld [vmem:[#allocation5] sm:$0x1]
    %v59 = vld [vmem:[#allocation5 + $0x8] sm:$0x1]
    %v60 = vld [vmem:[#allocation5 + $0x10] sm:$0x1]
    %v61 = vld [vmem:[%s0] sm:$0xf]
    %v62 = vld [vmem:[%s0 + $0x4] sm:$0xf]
    %v63 = vperm.slane %v58, 0
    %v66 = vunpack.c.l.b16 %v61
    %v67 = vunpack.c.l.b16 %v62
    %v68 = vpack.c.b16 %v67, %v66
    %vm69 = vcmask 31744
    %v71 = vsel %vm69, %v68, 0
    %vm73 = vcmask 1041408
    %v75 = vsel %vm73, %v48, 0
    %77 = vmatpush.bf16.msra.mxu0 0
    %78 = vmatpush.bf16.msra.mxu0 0
    %79 = vmatpush.bf16.msra.mxu0 0
    %80 = vmatpush.bf16.msra.mxu0 0
    %81 = vmatpush.bf16.msra.mxu0 0
    %82 = vmatpush.bf16.msra.mxu0 0
    %83 = vmatpush.bf16.msra.mxu0 0
    %84 = vmatpush.bf16.msra.mxu0 %v75
    %85 = vmatmul.bf16.gmra.mxu0 %v71
    %v86 = vpop.f32.mrf.mxu0
    %v87 = vadd.f32 %v63, %v86
    %v88 = vpop.f32.mrf.mxu0
    %v89 = vadd.f32 %v63, %v88
    %90 = vdwg.mxu0
    %v95 = vunpack.c.l.b16 %v49
    %v96 = vunpack.c.l.b16 %v50
    %v97 = vunpack.c.l.b16 %v51
    %v98 = vunpack.c.l.b16 %v52
    %v99 = vpack.c.b16 %v96, %v95
    %v100 = vpack.c.b16 %v98, %v97
    %vm103 = vcmask 261120
    %v105 = vsel %vm103, 0, 0
    %107 = vmatpush.bf16.msra.mxu0 0
    %108 = vmatpush.bf16.msra.mxu0 0
    %109 = vmatpush.bf16.msra.mxu0 0
    %110 = vmatpush.bf16.msra.mxu0 0
    %111 = vmatpush.bf16.msra.mxu0 0
    %112 = vmatpush.bf16.msra.mxu0 0
    %113 = vmatpush.bf16.msra.mxu0 %v100
    %114 = vmatpush.bf16.msra.mxu0 %v99
    %115 = vmatmul.bf16.gmra.mxu0 %v105
    %v116 = vpop.f32.mrf.mxu0
    %v117 = vadd.f32 %v87, %v116
    %v118 = vpop.f32.mrf.mxu0
    %119 = vdwg.mxu0
    %v120 = vxor.u32 %v117, 2147483648
    %v121 = vmul.f32 %v120, 1.442695
    %v122 = vpow.pop %v121
    %v123 = vadd.f32 %v122, 1.0
    %v124 = vrcp.pop %v123
    %v125 = vmul.f32 %v123, %v124
    %v126 = vsub.f32 1.0, %v125
    %v127 = vmul.f32 %v124, %v126
    %v128 = vadd.f32 %v124, %v127
    %vm129 = vweird.f32 %v123
    %vm130 = vweird.f32 %v124
    %vm131 = vmor %vm129, %vm130
    %v132 = vsel %vm131, %v124, %v128
    %v133 = vand.u32 2147483647, %v123
    %vm134 = vcmp.eq.f32.partialorder %v133, 8.507059e+37
    %v135 = vand.u32 %v123, 2147483648
    %v136 = vor.u32 1.1754944e-38, %v135
    %v137 = vsel %vm134, %v136, %v132
    %v138 = vmul.f32 1.0, %v137
    %v139 = vmul.f32 %v138, 2.0
    %v140 = vsub.f32 %v139, 1.0
    %v141 = vmul.f32 %v138, 0.0
    %143 = vrot.lane.b32.xlu0 %v140, 64
    %v144 = vpop.permute.xlu0 %143
    %v146 = vmul.f32 %v138, %v144
    %148 = vrot.lane.b32.xlu0 %v146, 32
    %v149 = vpop.permute.xlu0 %148
    %v151 = vadd.f32 %v141, %v149
    %v152 = vtanh.pop %v151
    %154 = vrot.lane.b32.xlu0 %v152, 64
    %v155 = vpop.permute.xlu0 %154
    %v157 = vmul.f32 %v138, %v155
    %v158 = vpack.c.bf16 %v157, %v157
    %160 = vrot.lane.b32.xlu0 %v158, 32
    %v161 = vpop.permute.xlu0 %160
    %v163 = vrot.slane %v87, 2
    %v166 = vsel %vm103, %v161, 0
    %168 = vmatpush.bf16.msra.mxu0 0
    %169 = vmatpush.bf16.msra.mxu0 0
    %170 = vmatpush.bf16.msra.mxu0 0
    %171 = vmatpush.bf16.msra.mxu0 0
    %172 = vmatpush.bf16.msra.mxu0 0
    %173 = vmatpush.bf16.msra.mxu0 0
    %174 = vmatpush.bf16.msra.mxu0 %v100
    %175 = vmatpush.bf16.msra.mxu0 %v99
    %176 = vmatmul.bf16.gmra.mxu0 %v166
    %v177 = vpop.f32.mrf.mxu0
    %v178 = vadd.f32 %v163, %v177
    %v179 = vpop.f32.mrf.mxu0
    %180 = vdwg.mxu0
    %v181 = vxor.u32 %v178, 2147483648
    %v182 = vmul.f32 %v181, 1.442695
    %v183 = vpow.pop %v182
    %v184 = vadd.f32 %v183, 1.0
    %v185 = vrcp.pop %v184
    %v186 = vmul.f32 %v184, %v185
    %v187 = vsub.f32 1.0, %v186
    %v188 = vmul.f32 %v185, %v187
    %v189 = vadd.f32 %v185, %v188
    %vm190 = vweird.f32 %v184
    %vm191 = vweird.f32 %v185
    %vm192 = vmor %vm190, %vm191
    %v193 = vsel %vm192, %v185, %v189
    %v194 = vand.u32 2147483647, %v184
    %vm195 = vcmp.eq.f32.partialorder %v194, 8.507059e+37
    %v196 = vand.u32 %v184, 2147483648
    %v197 = vor.u32 1.1754944e-38, %v196
    %v198 = vsel %vm195, %v197, %v193
    %v199 = vmul.f32 1.0, %v198
    %v200 = vmul.f32 %v199, 2.0
    %v201 = vsub.f32 %v200, 1.0
    %v202 = vmul.f32 %v199, %v151
    %204 = vrot.lane.b32.xlu0 %v201, 64
    %v205 = vpop.permute.xlu0 %204
    %v207 = vmul.f32 %v199, %v205
    %209 = vrot.lane.b32.xlu0 %v207, 32
    %v210 = vpop.permute.xlu0 %209
    %v212 = vadd.f32 %v202, %v210
    %v213 = vtanh.pop %v212
    %215 = vrot.lane.b32.xlu0 %v213, 64
    %v216 = vpop.permute.xlu0 %215
    %v218 = vmul.f32 %v199, %v216
    %v219 = vpack.c.bf16 %v218, %v218
    %221 = vrot.lane.b32.xlu0 %v219, 32
    %v222 = vpop.permute.xlu0 %221
    %v223 = vrot.slane %v87, 4
    %v226 = vsel %vm103, %v222, 0
    %228 = vmatpush.bf16.msra.mxu0 0
    %229 = vmatpush.bf16.msra.mxu0 0
    %230 = vmatpush.bf16.msra.mxu0 0
    %231 = vmatpush.bf16.msra.mxu0 0
    %232 = vmatpush.bf16.msra.mxu0 0
    %233 = vmatpush.bf16.msra.mxu0 0
    %234 = vmatpush.bf16.msra.mxu0 %v100
    %235 = vmatpush.bf16.msra.mxu0 %v99
    %236 = vmatmul.bf16.gmra.mxu0 %v226
    %v237 = vpop.f32.mrf.mxu0
    %v238 = vadd.f32 %v223, %v237
    %v239 = vpop.f32.mrf.mxu0
    %240 = vdwg.mxu0
    %v241 = vxor.u32 %v238, 2147483648
    %v242 = vmul.f32 %v241, 1.442695
    %v243 = vpow.pop %v242
    %v244 = vadd.f32 %v243, 1.0
    %v245 = vrcp.pop %v244
    %v246 = vmul.f32 %v244, %v245
    %v247 = vsub.f32 1.0, %v246
    %v248 = vmul.f32 %v245, %v247
    %v249 = vadd.f32 %v245, %v248
    %vm250 = vweird.f32 %v244
    %vm251 = vweird.f32 %v245
    %vm252 = vmor %vm250, %vm251
    %v253 = vsel %vm252, %v245, %v249
    %v254 = vand.u32 2147483647, %v244
    %vm255 = vcmp.eq.f32.partialorder %v254, 8.507059e+37
    %v256 = vand.u32 %v244, 2147483648
    %v257 = vor.u32 1.1754944e-38, %v256
    %v258 = vsel %vm255, %v257, %v253
    %v259 = vmul.f32 1.0, %v258
    %v260 = vmul.f32 %v259, 2.0
    %v261 = vsub.f32 %v260, 1.0
    %v262 = vmul.f32 %v259, %v212
    %264 = vrot.lane.b32.xlu0 %v261, 64
    %v265 = vpop.permute.xlu0 %264
    %v267 = vmul.f32 %v259, %v265
    %269 = vrot.lane.b32.xlu0 %v267, 32
    %v270 = vpop.permute.xlu0 %269
    %v272 = vadd.f32 %v262, %v270
    %v273 = vtanh.pop %v272
    %275 = vrot.lane.b32.xlu0 %v273, 64
    %v276 = vpop.permute.xlu0 %275
    %v278 = vmul.f32 %v259, %v276
    %v279 = vpack.c.bf16 %v278, %v278
    %281 = vrot.lane.b32.xlu0 %v279, 32
    %v282 = vpop.permute.xlu0 %281
    %v283 = vrot.slane %v87, 6
    %v286 = vsel %vm103, %v282, 0
    %288 = vmatpush.bf16.msra.mxu0 0
    %289 = vmatpush.bf16.msra.mxu0 0
    %290 = vmatpush.bf16.msra.mxu0 0
    %291 = vmatpush.bf16.msra.mxu0 0
    %292 = vmatpush.bf16.msra.mxu0 0
    %293 = vmatpush.bf16.msra.mxu0 0
    %294 = vmatpush.bf16.msra.mxu0 %v100
    %295 = vmatpush.bf16.msra.mxu0 %v99
    %296 = vmatmul.bf16.gmra.mxu0 %v286
    %v297 = vpop.f32.mrf.mxu0
    %v298 = vadd.f32 %v283, %v297
    %v299 = vpop.f32.mrf.mxu0
    %300 = vdwg.mxu0
    %v301 = vxor.u32 %v298, 2147483648
    %v302 = vmul.f32 %v301, 1.442695
    %v303 = vpow.pop %v302
    %v304 = vadd.f32 %v303, 1.0
    %v305 = vrcp.pop %v304
    %v306 = vmul.f32 %v304, %v305
    %v307 = vsub.f32 1.0, %v306
    %v308 = vmul.f32 %v305, %v307
    %v309 = vadd.f32 %v305, %v308
    %vm310 = vweird.f32 %v304
    %vm311 = vweird.f32 %v305
    %vm312 = vmor %vm310, %vm311
    %v313 = vsel %vm312, %v305, %v309
    %v314 = vand.u32 2147483647, %v304
    %vm315 = vcmp.eq.f32.partialorder %v314, 8.507059e+37
    %v316 = vand.u32 %v304, 2147483648
    %v317 = vor.u32 1.1754944e-38, %v316
    %v318 = vsel %vm315, %v317, %v313
    %v319 = vmul.f32 1.0, %v318
    %v320 = vmul.f32 %v319, 2.0
    %v321 = vsub.f32 %v320, 1.0
    %v322 = vmul.f32 %v319, %v272
    %324 = vrot.lane.b32.xlu0 %v321, 64
    %v325 = vpop.permute.xlu0 %324
    %v327 = vmul.f32 %v319, %v325
    %329 = vrot.lane.b32.xlu0 %v327, 32
    %v330 = vpop.permute.xlu0 %329
    %v332 = vadd.f32 %v322, %v330
    %v333 = vtanh.pop %v332
    %335 = vrot.lane.b32.xlu0 %v333, 64
    %v336 = vpop.permute.xlu0 %335
    %v338 = vmul.f32 %v319, %v336
    %v339 = vpack.c.bf16 %v338, %v338
    %341 = vrot.lane.b32.xlu0 %v339, 32
    %v342 = vpop.permute.xlu0 %341
    %v344 = vsel %vm103, %v342, 0
    %346 = vmatpush.bf16.msra.mxu0 0
    %347 = vmatpush.bf16.msra.mxu0 0
    %348 = vmatpush.bf16.msra.mxu0 0
    %349 = vmatpush.bf16.msra.mxu0 0
    %350 = vmatpush.bf16.msra.mxu0 0
    %351 = vmatpush.bf16.msra.mxu0 0
    %352 = vmatpush.bf16.msra.mxu0 %v100
    %353 = vmatpush.bf16.msra.mxu0 %v99
    %354 = vmatmul.bf16.gmra.mxu0 %v344
    %v355 = vpop.f32.mrf.mxu0
    %v356 = vadd.f32 %v89, %v355
    %v357 = vpop.f32.mrf.mxu0
    %358 = vdwg.mxu0
    %v359 = vxor.u32 %v356, 2147483648
    %v360 = vmul.f32 %v359, 1.442695
    %v361 = vpow.pop %v360
    %v362 = vadd.f32 %v361, 1.0
    %v363 = vrcp.pop %v362
    %v364 = vmul.f32 %v362, %v363
    %v365 = vsub.f32 1.0, %v364
    %v366 = vmul.f32 %v363, %v365
    %v367 = vadd.f32 %v363, %v366
    %vm368 = vweird.f32 %v362
    %vm369 = vweird.f32 %v363
    %vm370 = vmor %vm368, %vm369
    %v371 = vsel %vm370, %v363, %v367
    %v372 = vand.u32 2147483647, %v362
    %vm373 = vcmp.eq.f32.partialorder %v372, 8.507059e+37
    %v374 = vand.u32 %v362, 2147483648
    %v375 = vor.u32 1.1754944e-38, %v374
    %v376 = vsel %vm373, %v375, %v371
    %v377 = vmul.f32 1.0, %v376
    %v378 = vmul.f32 %v377, 2.0
    %v379 = vsub.f32 %v378, 1.0
    %v380 = vmul.f32 %v377, %v332
    %382 = vrot.lane.b32.xlu0 %v379, 64
    %v383 = vpop.permute.xlu0 %382
    %v385 = vmul.f32 %v377, %v383
    %387 = vrot.lane.b32.xlu0 %v385, 32
    %v388 = vpop.permute.xlu0 %387
    %v390 = vadd.f32 %v380, %v388
    %v391 = vtanh.pop %v390
    %393 = vrot.lane.b32.xlu0 %v391, 64
    %v394 = vpop.permute.xlu0 %393
    %v396 = vmul.f32 %v377, %v394
    %v397 = vpack.c.bf16 %v396, %v396
    %399 = vrot.lane.b32.xlu0 %v397, 32
    %v400 = vpop.permute.xlu0 %399
    %v402 = vrot.slane %v89, 2
    %v405 = vsel %vm103, %v400, 0
    %407 = vmatpush.bf16.msra.mxu0 0
    %408 = vmatpush.bf16.msra.mxu0 0
    %409 = vmatpush.bf16.msra.mxu0 0
    %410 = vmatpush.bf16.msra.mxu0 0
    %411 = vmatpush.bf16.msra.mxu0 0
    %412 = vmatpush.bf16.msra.mxu0 0
    %413 = vmatpush.bf16.msra.mxu0 %v100
    %414 = vmatpush.bf16.msra.mxu0 %v99
    %415 = vmatmul.bf16.gmra.mxu0 %v405
    %v416 = vpop.f32.mrf.mxu0
    %v417 = vadd.f32 %v402, %v416
    %v418 = vpop.f32.mrf.mxu0
    %419 = vdwg.mxu0
    %v420 = vxor.u32 %v417, 2147483648
    %v421 = vmul.f32 %v420, 1.442695
    %v422 = vpow.pop %v421
    %v423 = vadd.f32 %v422, 1.0
    %v424 = vrcp.pop %v423
    %v425 = vmul.f32 %v423, %v424
    %v426 = vsub.f32 1.0, %v425
    %v427 = vmul.f32 %v424, %v426
    %v428 = vadd.f32 %v424, %v427
    %vm429 = vweird.f32 %v423
    %vm430 = vweird.f32 %v424
    %vm431 = vmor %vm429, %vm430
    %v432 = vsel %vm431, %v424, %v428
    %v433 = vand.u32 2147483647, %v423
    %vm434 = vcmp.eq.f32.partialorder %v433, 8.507059e+37
    %v435 = vand.u32 %v423, 2147483648
    %v436 = vor.u32 1.1754944e-38, %v435
    %v437 = vsel %vm434, %v436, %v432
    %v438 = vmul.f32 1.0, %v437
    %v439 = vmul.f32 %v438, 2.0
    %v440 = vsub.f32 %v439, 1.0
    %v441 = vmul.f32 %v438, %v390
    %443 = vrot.lane.b32.xlu0 %v440, 64
    %v444 = vpop.permute.xlu0 %443
    %v446 = vmul.f32 %v438, %v444
    %448 = vrot.lane.b32.xlu0 %v446, 32
    %v449 = vpop.permute.xlu0 %448
    %v451 = vadd.f32 %v441, %v449
    %v452 = vtanh.pop %v451
    %454 = vrot.lane.b32.xlu0 %v452, 64
    %v455 = vpop.permute.xlu0 %454
    %v457 = vmul.f32 %v438, %v455
    %v458 = vpack.c.bf16 %v457, %v457
    %460 = vrot.lane.b32.xlu0 %v458, 32
    %v461 = vpop.permute.xlu0 %460
    %v462 = vrot.slane %v89, 4
    %v465 = vsel %vm103, %v461, 0
    %467 = vmatpush.bf16.msra.mxu0 0
    %468 = vmatpush.bf16.msra.mxu0 0
    %469 = vmatpush.bf16.msra.mxu0 0
    %470 = vmatpush.bf16.msra.mxu0 0
    %471 = vmatpush.bf16.msra.mxu0 0
    %472 = vmatpush.bf16.msra.mxu0 0
    %473 = vmatpush.bf16.msra.mxu0 %v100
    %474 = vmatpush.bf16.msra.mxu0 %v99
    %475 = vmatmul.bf16.gmra.mxu0 %v465
    %v476 = vpop.f32.mrf.mxu0
    %v477 = vadd.f32 %v462, %v476
    %v478 = vpop.f32.mrf.mxu0
    %479 = vdwg.mxu0
    %v480 = vxor.u32 %v477, 2147483648
    %v481 = vmul.f32 %v480, 1.442695
    %v482 = vpow.pop %v481
    %v483 = vadd.f32 %v482, 1.0
    %v484 = vrcp.pop %v483
    %v485 = vmul.f32 %v483, %v484
    %v486 = vsub.f32 1.0, %v485
    %v487 = vmul.f32 %v484, %v486
    %v488 = vadd.f32 %v484, %v487
    %vm489 = vweird.f32 %v483
    %vm490 = vweird.f32 %v484
    %vm491 = vmor %vm489, %vm490
    %v492 = vsel %vm491, %v484, %v488
    %v493 = vand.u32 2147483647, %v483
    %vm494 = vcmp.eq.f32.partialorder %v493, 8.507059e+37
    %v495 = vand.u32 %v483, 2147483648
    %v496 = vor.u32 1.1754944e-38, %v495
    %v497 = vsel %vm494, %v496, %v492
    %v498 = vmul.f32 1.0, %v497
    %v499 = vmul.f32 %v498, 2.0
    %v500 = vsub.f32 %v499, 1.0
    %v501 = vmul.f32 %v498, %v451
    %503 = vrot.lane.b32.xlu0 %v500, 64
    %v504 = vpop.permute.xlu0 %503
    %v506 = vmul.f32 %v498, %v504
    %508 = vrot.lane.b32.xlu0 %v506, 32
    %v509 = vpop.permute.xlu0 %508
    %v511 = vadd.f32 %v501, %v509
    %v512 = vtanh.pop %v511
    %514 = vrot.lane.b32.xlu0 %v512, 64
    %v515 = vpop.permute.xlu0 %514
    %v517 = vmul.f32 %v498, %v515
    %v518 = vpack.c.bf16 %v517, %v517
    %520 = vrot.lane.b32.xlu0 %v518, 32
    %v521 = vpop.permute.xlu0 %520
    %v522 = vrot.slane %v89, 6
    %v525 = vsel %vm103, %v521, 0
    %527 = vmatpush.bf16.msra.mxu0 0
    %528 = vmatpush.bf16.msra.mxu0 0
    %529 = vmatpush.bf16.msra.mxu0 0
    %530 = vmatpush.bf16.msra.mxu0 0
    %531 = vmatpush.bf16.msra.mxu0 0
    %532 = vmatpush.bf16.msra.mxu0 0
    %533 = vmatpush.bf16.msra.mxu0 %v100
    %534 = vmatpush.bf16.msra.mxu0 %v99
    %535 = vmatmul.bf16.gmra.mxu0 %v525
    %v536 = vpop.f32.mrf.mxu0
    %v537 = vadd.f32 %v522, %v536
    %v538 = vpop.f32.mrf.mxu0
    %539 = vdwg.mxu0
    %v540 = vxor.u32 %v537, 2147483648
    %v541 = vmul.f32 %v540, 1.442695
    %v542 = vpow.pop %v541
    %v543 = vadd.f32 %v542, 1.0
    %v544 = vrcp.pop %v543
    %v545 = vmul.f32 %v543, %v544
    %v546 = vsub.f32 1.0, %v545
    %v547 = vmul.f32 %v544, %v546
    %v548 = vadd.f32 %v544, %v547
    %vm549 = vweird.f32 %v543
    %vm550 = vweird.f32 %v544
    %vm551 = vmor %vm549, %vm550
    %v552 = vsel %vm551, %v544, %v548
    %v553 = vand.u32 2147483647, %v543
    %vm554 = vcmp.eq.f32.partialorder %v553, 8.507059e+37
    %v555 = vand.u32 %v543, 2147483648
    %v556 = vor.u32 1.1754944e-38, %v555
    %v557 = vsel %vm554, %v556, %v552
    %v558 = vmul.f32 1.0, %v557
    %v559 = vmul.f32 %v558, 2.0
    %v560 = vsub.f32 %v559, 1.0
    %v561 = vmul.f32 %v558, %v511
    %563 = vrot.lane.b32.xlu0 %v560, 64
    %v564 = vpop.permute.xlu0 %563
    %v566 = vmul.f32 %v558, %v564
    %568 = vrot.lane.b32.xlu0 %v566, 32
    %v569 = vpop.permute.xlu0 %568
    %v571 = vadd.f32 %v561, %v569
    %v572 = vtanh.pop %v571
    %574 = vrot.lane.b32.xlu0 %v572, 64
    %v575 = vpop.permute.xlu0 %574
    %v577 = vmul.f32 %v558, %v575
    %v578 = vperm.slane %v60, 0
    %v579 = vpack.c.b16 %v67, %v67
    %v580 = vrot.slane %v579, 3
    %v582 = vsel %vm69, %v580, 0
    %v585 = vsel %vm73, %v57, 0
    %587 = vmatpush.bf16.msra.mxu0 0
    %588 = vmatpush.bf16.msra.mxu0 0
    %589 = vmatpush.bf16.msra.mxu0 0
    %590 = vmatpush.bf16.msra.mxu0 0
    %591 = vmatpush.bf16.msra.mxu0 0
    %592 = vmatpush.bf16.msra.mxu0 0
    %593 = vmatpush.bf16.msra.mxu0 0
    %594 = vmatpush.bf16.msra.mxu0 %v585
    %595 = vmatmul.bf16.gmra.mxu0 %v582
    %v596 = vpop.f32.mrf.mxu0
    %v597 = vadd.f32 %v578, %v596
    %v598 = vpop.f32.mrf.mxu0
    %599 = vdwg.mxu0
    %v600 = vpack.c.bf16 %v577, %v577
    %v601 = vld [vmem:[#allocation2 + $0x30] sm:$0xf]
    %v602 = vld [vmem:[#allocation2 + $0x34] sm:$0xf]
    %v603 = vld [vmem:[#allocation2 + $0x38] sm:$0xf]
    %v604 = vld [vmem:[#allocation2 + $0x3c] sm:$0xf]
    %606 = vrot.lane.b32.xlu0 %v600, 32
    %v607 = vpop.permute.xlu0 %606
    %v612 = vunpack.c.l.b16 %v601
    %v613 = vunpack.c.l.b16 %v602
    %v614 = vunpack.c.l.b16 %v603
    %v615 = vunpack.c.l.b16 %v604
    %v616 = vpack.c.b16 %v613, %v612
    %v617 = vpack.c.b16 %v615, %v614
    %v621 = vsel %vm103, %v607, 0
    %623 = vmatpush.bf16.msra.mxu0 0
    %624 = vmatpush.bf16.msra.mxu0 0
    %625 = vmatpush.bf16.msra.mxu0 0
    %626 = vmatpush.bf16.msra.mxu0 0
    %627 = vmatpush.bf16.msra.mxu0 0
    %628 = vmatpush.bf16.msra.mxu0 0
    %629 = vmatpush.bf16.msra.mxu0 %v617
    %630 = vmatpush.bf16.msra.mxu0 %v616
    %631 = vmatmul.bf16.gmra.mxu0 %v621
    %v632 = vpop.f32.mrf.mxu0
    %v633 = vadd.f32 0.0, %v632
    %v634 = vpop.f32.mrf.mxu0
    %635 = vdwg.mxu0
    %v636 = vadd.f32 %v597, %v633
    %v637 = vperm.slane %v59, 0
    %v642 = vunpack.c.l.b16 %v53
    %v643 = vunpack.c.l.b16 %v54
    %v644 = vunpack.c.l.b16 %v55
    %v645 = vunpack.c.l.b16 %v56
    %v646 = vpack.c.b16 %v643, %v642
    %v647 = vpack.c.b16 %v645, %v644
    %650 = vmatpush.bf16.msra.mxu0 0
    %651 = vmatpush.bf16.msra.mxu0 0
    %652 = vmatpush.bf16.msra.mxu0 0
    %653 = vmatpush.bf16.msra.mxu0 0
    %654 = vmatpush.bf16.msra.mxu0 0
    %655 = vmatpush.bf16.msra.mxu0 0
    %656 = vmatpush.bf16.msra.mxu0 %v647
    %657 = vmatpush.bf16.msra.mxu0 %v646
    %658 = vmatmul.bf16.gmra.mxu0 %v621
    %v659 = vpop.f32.mrf.mxu0
    %v660 = vadd.f32 %v637, %v659
    %v661 = vpop.f32.mrf.mxu0
    %662 = vdwg.mxu0
    %v663 = vxor.u32 %v660, 2147483648
    %v664 = vmul.f32 %v663, 1.442695
    %v665 = vpow.pop %v664
    %v666 = vadd.f32 %v665, 1.0
    %v667 = vrcp.pop %v666
    %v668 = vmul.f32 %v666, %v667
    %v669 = vsub.f32 1.0, %v668
    %v670 = vmul.f32 %v667, %v669
    %v671 = vadd.f32 %v667, %v670
    %vm672 = vweird.f32 %v666
    %vm673 = vweird.f32 %v667
    %vm674 = vmor %vm672, %vm673
    %v675 = vsel %vm674, %v667, %v671
    %v676 = vand.u32 2147483647, %v666
    %vm677 = vcmp.eq.f32.partialorder %v676, 8.507059e+37
    %v678 = vand.u32 %v666, 2147483648
    %v679 = vor.u32 1.1754944e-38, %v678
    %v680 = vsel %vm677, %v679, %v675
    %v681 = vmul.f32 1.0, %v680
    %v682 = vmul.f32 %v681, 2.0
    %v683 = vsub.f32 %v682, 1.0
    %v684 = vmul.f32 %v681, %v571
    %686 = vrot.lane.b32.xlu0 %v683, 64
    %v687 = vpop.permute.xlu0 %686
    %v689 = vmul.f32 %v681, %v687
    %691 = vrot.lane.b32.xlu0 %v689, 32
    %v692 = vpop.permute.xlu0 %691
    %v694 = vadd.f32 %v684, %v692
    %v695 = vtanh.pop %v694
    %697 = vrot.lane.b32.xlu0 %v695, 64
    %v698 = vpop.permute.xlu0 %697
    %v700 = vmul.f32 %v681, %v698
    %v701 = vpack.c.bf16 %v700, %v700
    %v702 = vld [vmem:[#allocation2 + $0x40] sm:$0xf]
    %v703 = vld [vmem:[#allocation2 + $0x44] sm:$0xf]
    %v704 = vld [vmem:[#allocation2 + $0x48] sm:$0xf]
    %v705 = vld [vmem:[#allocation2 + $0x4c] sm:$0xf]
    %707 = vrot.lane.b32.xlu0 %v701, 32
    %v708 = vpop.permute.xlu0 %707
    %v713 = vunpack.c.l.b16 %v702
    %v714 = vunpack.c.l.b16 %v703
    %v715 = vunpack.c.l.b16 %v704
    %v716 = vunpack.c.l.b16 %v705
    %v717 = vpack.c.b16 %v714, %v713
    %v718 = vpack.c.b16 %v716, %v715
    %v722 = vsel %vm103, %v708, 0
    %724 = vmatpush.bf16.msra.mxu0 0
    %725 = vmatpush.bf16.msra.mxu0 0
    %726 = vmatpush.bf16.msra.mxu0 0
    %727 = vmatpush.bf16.msra.mxu0 0
    %728 = vmatpush.bf16.msra.mxu0 0
    %729 = vmatpush.bf16.msra.mxu0 0
    %730 = vmatpush.bf16.msra.mxu0 %v718
    %731 = vmatpush.bf16.msra.mxu0 %v717
    %732 = vmatmul.bf16.gmra.mxu0 %v722
    %v733 = vpop.f32.mrf.mxu0
    %v734 = vadd.f32 0.0, %v733
    %v735 = vpop.f32.mrf.mxu0
    %736 = vdwg.mxu0
    %v737 = vadd.f32 %v636, %v734
    %738 = vmatpush.bf16.msra.mxu0 0
    %739 = vmatpush.bf16.msra.mxu0 0
    %740 = vmatpush.bf16.msra.mxu0 0
    %741 = vmatpush.bf16.msra.mxu0 0
    %742 = vmatpush.bf16.msra.mxu0 0
    %743 = vmatpush.bf16.msra.mxu0 0
    %744 = vmatpush.bf16.msra.mxu0 %v647
    %745 = vmatpush.bf16.msra.mxu0 %v646
    %746 = vmatmul.bf16.gmra.mxu0 %v722
    %v747 = vpop.f32.mrf.mxu0
    %v748 = vadd.f32 %v637, %v747
    %v749 = vpop.f32.mrf.mxu0
    %750 = vdwg.mxu0
    %v751 = vxor.u32 %v748, 2147483648
    %v752 = vmul.f32 %v751, 1.442695
    %v753 = vpow.pop %v752
    %v754 = vadd.f32 %v753, 1.0
    %v755 = vrcp.pop %v754
    %v756 = vmul.f32 %v754, %v755
    %v757 = vsub.f32 1.0, %v756
    %v758 = vmul.f32 %v755, %v757
    %v759 = vadd.f32 %v755, %v758
    %vm760 = vweird.f32 %v754
    %vm761 = vweird.f32 %v755
    %vm762 = vmor %vm760, %vm761
    %v763 = vsel %vm762, %v755, %v759
    %v764 = vand.u32 2147483647, %v754
    %vm765 = vcmp.eq.f32.partialorder %v764, 8.507059e+37
    %v766 = vand.u32 %v754, 2147483648
    %v767 = vor.u32 1.1754944e-38, %v766
    %v768 = vsel %vm765, %v767, %v763
    %v769 = vmul.f32 1.0, %v768
    %v770 = vmul.f32 %v769, 2.0
    %v771 = vsub.f32 %v770, 1.0
    %v772 = vmul.f32 %v769, %v694
    %774 = vrot.lane.b32.xlu0 %v771, 64
    %v775 = vpop.permute.xlu0 %774
    %v777 = vmul.f32 %v769, %v775
    %779 = vrot.lane.b32.xlu0 %v777, 32
    %v780 = vpop.permute.xlu0 %779
    %v782 = vadd.f32 %v772, %v780
    %v783 = vtanh.pop %v782
    %785 = vrot.lane.b32.xlu0 %v783, 64
    %v786 = vpop.permute.xlu0 %785
    %v788 = vmul.f32 %v769, %v786
    %v789 = vpack.c.bf16 %v788, %v788
    %v790 = vld [vmem:[#allocation2 + $0x50] sm:$0xf]
    %v791 = vld [vmem:[#allocation2 + $0x54] sm:$0xf]
    %v792 = vld [vmem:[#allocation2 + $0x58] sm:$0xf]
    %v793 = vld [vmem:[#allocation2 + $0x5c] sm:$0xf]
    %795 = vrot.lane.b32.xlu0 %v789, 32
    %v796 = vpop.permute.xlu0 %795
    %v801 = vunpack.c.l.b16 %v790
    %v802 = vunpack.c.l.b16 %v791
    %v803 = vunpack.c.l.b16 %v792
    %v804 = vunpack.c.l.b16 %v793
    %v805 = vpack.c.b16 %v802, %v801
    %v806 = vpack.c.b16 %v804, %v803
    %v810 = vsel %vm103, %v796, 0
    %812 = vmatpush.bf16.msra.mxu0 0
    %813 = vmatpush.bf16.msra.mxu0 0
    %814 = vmatpush.bf16.msra.mxu0 0
    %815 = vmatpush.bf16.msra.mxu0 0
    %816 = vmatpush.bf16.msra.mxu0 0
    %817 = vmatpush.bf16.msra.mxu0 0
    %818 = vmatpush.bf16.msra.mxu0 %v806
    %819 = vmatpush.bf16.msra.mxu0 %v805
    %820 = vmatmul.bf16.gmra.mxu0 %v810
    %v821 = vpop.f32.mrf.mxu0
    %v822 = vadd.f32 0.0, %v821
    %v823 = vpop.f32.mrf.mxu0
    %824 = vdwg.mxu0
    %v825 = vadd.f32 %v737, %v822
    %826 = vmatpush.bf16.msra.mxu0 0
    %827 = vmatpush.bf16.msra.mxu0 0
    %828 = vmatpush.bf16.msra.mxu0 0
    %829 = vmatpush.bf16.msra.mxu0 0
    %830 = vmatpush.bf16.msra.mxu0 0
    %831 = vmatpush.bf16.msra.mxu0 0
    %832 = vmatpush.bf16.msra.mxu0 %v647
    %833 = vmatpush.bf16.msra.mxu0 %v646
    %834 = vmatmul.bf16.gmra.mxu0 %v810
    %v835 = vpop.f32.mrf.mxu0
    %v836 = vadd.f32 %v637, %v835
    %v837 = vpop.f32.mrf.mxu0
    %838 = vdwg.mxu0
    %v839 = vxor.u32 %v836, 2147483648
    %v840 = vmul.f32 %v839, 1.442695
    %v841 = vpow.pop %v840
    %v842 = vadd.f32 %v841, 1.0
    %v843 = vrcp.pop %v842
    %v844 = vmul.f32 %v842, %v843
    %v845 = vsub.f32 1.0, %v844
    %v846 = vmul.f32 %v843, %v845
    %v847 = vadd.f32 %v843, %v846
    %vm848 = vweird.f32 %v842
    %vm849 = vweird.f32 %v843
    %vm850 = vmor %vm848, %vm849
    %v851 = vsel %vm850, %v843, %v847
    %v852 = vand.u32 2147483647, %v842
    %vm853 = vcmp.eq.f32.partialorder %v852, 8.507059e+37
    %v854 = vand.u32 %v842, 2147483648
    %v855 = vor.u32 1.1754944e-38, %v854
    %v856 = vsel %vm853, %v855, %v851
    %v857 = vmul.f32 1.0, %v856
    %v858 = vmul.f32 %v857, 2.0
    %v859 = vsub.f32 %v858, 1.0
    %v860 = vmul.f32 %v857, %v782
    %862 = vrot.lane.b32.xlu0 %v859, 64
    %v863 = vpop.permute.xlu0 %862
    %v865 = vmul.f32 %v857, %v863
    %867 = vrot.lane.b32.xlu0 %v865, 32
    %v868 = vpop.permute.xlu0 %867
    %v870 = vadd.f32 %v860, %v868
    %v871 = vtanh.pop %v870
    %873 = vrot.lane.b32.xlu0 %v871, 64
    %v874 = vpop.permute.xlu0 %873
    %v876 = vmul.f32 %v857, %v874
    %v877 = vpack.c.bf16 %v876, %v876
    %v878 = vld [vmem:[#allocation2 + $0x60] sm:$0xf]
    %v879 = vld [vmem:[#allocation2 + $0x64] sm:$0xf]
    %v880 = vld [vmem:[#allocation2 + $0x68] sm:$0xf]
    %v881 = vld [vmem:[#allocation2 + $0x6c] sm:$0xf]
    %883 = vrot.lane.b32.xlu0 %v877, 32
    %v884 = vpop.permute.xlu0 %883
    %v889 = vunpack.c.l.b16 %v878
    %v890 = vunpack.c.l.b16 %v879
    %v891 = vunpack.c.l.b16 %v880
    %v892 = vunpack.c.l.b16 %v881
    %v893 = vpack.c.b16 %v890, %v889
    %v894 = vpack.c.b16 %v892, %v891
    %v898 = vsel %vm103, %v884, 0
    %900 = vmatpush.bf16.msra.mxu0 0
    %901 = vmatpush.bf16.msra.mxu0 0
    %902 = vmatpush.bf16.msra.mxu0 0
    %903 = vmatpush.bf16.msra.mxu0 0
    %904 = vmatpush.bf16.msra.mxu0 0
    %905 = vmatpush.bf16.msra.mxu0 0
    %906 = vmatpush.bf16.msra.mxu0 %v894
    %907 = vmatpush.bf16.msra.mxu0 %v893
    %908 = vmatmul.bf16.gmra.mxu0 %v898
    %v909 = vpop.f32.mrf.mxu0
    %v910 = vadd.f32 0.0, %v909
    %v911 = vpop.f32.mrf.mxu0
    %912 = vdwg.mxu0
    %v913 = vadd.f32 %v825, %v910
    %914 = vmatpush.bf16.msra.mxu0 0
    %915 = vmatpush.bf16.msra.mxu0 0
    %916 = vmatpush.bf16.msra.mxu0 0
    %917 = vmatpush.bf16.msra.mxu0 0
    %918 = vmatpush.bf16.msra.mxu0 0
    %919 = vmatpush.bf16.msra.mxu0 0
    %920 = vmatpush.bf16.msra.mxu0 %v647
    %921 = vmatpush.bf16.msra.mxu0 %v646
    %922 = vmatmul.bf16.gmra.mxu0 %v898
    %v923 = vpop.f32.mrf.mxu0
    %v924 = vadd.f32 %v637, %v923
    %v925 = vpop.f32.mrf.mxu0
    %926 = vdwg.mxu0
    %v927 = vxor.u32 %v924, 2147483648
    %v928 = vmul.f32 %v927, 1.442695
    %v929 = vpow.pop %v928
    %v930 = vadd.f32 %v929, 1.0
    %v931 = vrcp.pop %v930
    %v932 = vmul.f32 %v930, %v931
    %v933 = vsub.f32 1.0, %v932
    %v934 = vmul.f32 %v931, %v933
    %v935 = vadd.f32 %v931, %v934
    %vm936 = vweird.f32 %v930
    %vm937 = vweird.f32 %v931
    %vm938 = vmor %vm936, %vm937
    %v939 = vsel %vm938, %v931, %v935
    %v940 = vand.u32 2147483647, %v930
    %vm941 = vcmp.eq.f32.partialorder %v940, 8.507059e+37
    %v942 = vand.u32 %v930, 2147483648
    %v943 = vor.u32 1.1754944e-38, %v942
    %v944 = vsel %vm941, %v943, %v939
    %v945 = vmul.f32 1.0, %v944
    %v946 = vmul.f32 %v945, 2.0
    %v947 = vsub.f32 %v946, 1.0
    %v948 = vmul.f32 %v945, %v870
    %950 = vrot.lane.b32.xlu0 %v947, 64
    %v951 = vpop.permute.xlu0 %950
    %v953 = vmul.f32 %v945, %v951
    %955 = vrot.lane.b32.xlu0 %v953, 32
    %v956 = vpop.permute.xlu0 %955
    %v958 = vadd.f32 %v948, %v956
    %v959 = vtanh.pop %v958
    %961 = vrot.lane.b32.xlu0 %v959, 64
    %v962 = vpop.permute.xlu0 %961
    %v964 = vmul.f32 %v945, %v962
    %v965 = vpack.c.bf16 %v964, %v964
    %v966 = vld [vmem:[#allocation2 + $0x70] sm:$0xf]
    %v967 = vld [vmem:[#allocation2 + $0x74] sm:$0xf]
    %v968 = vld [vmem:[#allocation2 + $0x78] sm:$0xf]
    %v969 = vld [vmem:[#allocation2 + $0x7c] sm:$0xf]
    %971 = vrot.lane.b32.xlu0 %v965, 32
    %v972 = vpop.permute.xlu0 %971
    %v977 = vunpack.c.l.b16 %v966
    %v978 = vunpack.c.l.b16 %v967
    %v979 = vunpack.c.l.b16 %v968
    %v980 = vunpack.c.l.b16 %v969
    %v981 = vpack.c.b16 %v978, %v977
    %v982 = vpack.c.b16 %v980, %v979
    %v986 = vsel %vm103, %v972, 0
    %988 = vmatpush.bf16.msra.mxu0 0
    %989 = vmatpush.bf16.msra.mxu0 0
    %990 = vmatpush.bf16.msra.mxu0 0
    %991 = vmatpush.bf16.msra.mxu0 0
    %992 = vmatpush.bf16.msra.mxu0 0
    %993 = vmatpush.bf16.msra.mxu0 0
    %994 = vmatpush.bf16.msra.mxu0 %v982
    %995 = vmatpush.bf16.msra.mxu0 %v981
    %996 = vmatmul.bf16.gmra.mxu0 %v986
    %v997 = vpop.f32.mrf.mxu0
    %v998 = vadd.f32 0.0, %v997
    %v999 = vpop.f32.mrf.mxu0
    %1000 = vdwg.mxu0
    %v1001 = vadd.f32 %v913, %v998
    %1002 = vmatpush.bf16.msra.mxu0 0
    %1003 = vmatpush.bf16.msra.mxu0 0
    %1004 = vmatpush.bf16.msra.mxu0 0
    %1005 = vmatpush.bf16.msra.mxu0 0
    %1006 = vmatpush.bf16.msra.mxu0 0
    %1007 = vmatpush.bf16.msra.mxu0 0
    %1008 = vmatpush.bf16.msra.mxu0 %v647
    %1009 = vmatpush.bf16.msra.mxu0 %v646
    %1010 = vmatmul.bf16.gmra.mxu0 %v986
    %v1011 = vpop.f32.mrf.mxu0
    %v1012 = vadd.f32 %v637, %v1011
    %v1013 = vpop.f32.mrf.mxu0
    %1014 = vdwg.mxu0
    %v1015 = vxor.u32 %v1012, 2147483648
    %v1016 = vmul.f32 %v1015, 1.442695
    %v1017 = vpow.pop %v1016
    %v1018 = vadd.f32 %v1017, 1.0
    %v1019 = vrcp.pop %v1018
    %v1020 = vmul.f32 %v1018, %v1019
    %v1021 = vsub.f32 1.0, %v1020
    %v1022 = vmul.f32 %v1019, %v1021
    %v1023 = vadd.f32 %v1019, %v1022
    %vm1024 = vweird.f32 %v1018
    %vm1025 = vweird.f32 %v1019
    %vm1026 = vmor %vm1024, %vm1025
    %v1027 = vsel %vm1026, %v1019, %v1023
    %v1028 = vand.u32 2147483647, %v1018
    %vm1029 = vcmp.eq.f32.partialorder %v1028, 8.507059e+37
    %v1030 = vand.u32 %v1018, 2147483648
    %v1031 = vor.u32 1.1754944e-38, %v1030
    %v1032 = vsel %vm1029, %v1031, %v1027
    %v1033 = vmul.f32 1.0, %v1032
    %v1034 = vmul.f32 %v1033, 2.0
    %v1035 = vsub.f32 %v1034, 1.0
    %v1036 = vmul.f32 %v1033, %v958
    %1038 = vrot.lane.b32.xlu0 %v1035, 64
    %v1039 = vpop.permute.xlu0 %1038
    %v1041 = vmul.f32 %v1033, %v1039
    %1043 = vrot.lane.b32.xlu0 %v1041, 32
    %v1044 = vpop.permute.xlu0 %1043
    %v1046 = vadd.f32 %v1036, %v1044
    %v1047 = vtanh.pop %v1046
    %1049 = vrot.lane.b32.xlu0 %v1047, 64
    %v1050 = vpop.permute.xlu0 %1049
    %v1052 = vmul.f32 %v1033, %v1050
    %v1053 = vpack.c.bf16 %v1052, %v1052
    %v1054 = vld [vmem:[#allocation2 + $0x80] sm:$0xf]
    %v1055 = vld [vmem:[#allocation2 + $0x84] sm:$0xf]
    %v1056 = vld [vmem:[#allocation2 + $0x88] sm:$0xf]
    %v1057 = vld [vmem:[#allocation2 + $0x8c] sm:$0xf]
    %1059 = vrot.lane.b32.xlu0 %v1053, 32
    %v1060 = vpop.permute.xlu0 %1059
    %v1065 = vunpack.c.l.b16 %v1054
    %v1066 = vunpack.c.l.b16 %v1055
    %v1067 = vunpack.c.l.b16 %v1056
    %v1068 = vunpack.c.l.b16 %v1057
    %v1069 = vpack.c.b16 %v1066, %v1065
    %v1070 = vpack.c.b16 %v1068, %v1067
    %v1074 = vsel %vm103, %v1060, 0
    %1076 = vmatpush.bf16.msra.mxu0 0
    %1077 = vmatpush.bf16.msra.mxu0 0
    %1078 = vmatpush.bf16.msra.mxu0 0
    %1079 = vmatpush.bf16.msra.mxu0 0
    %1080 = vmatpush.bf16.msra.mxu0 0
    %1081 = vmatpush.bf16.msra.mxu0 0
    %1082 = vmatpush.bf16.msra.mxu0 %v1070
    %1083 = vmatpush.bf16.msra.mxu0 %v1069
    %1084 = vmatmul.bf16.gmra.mxu0 %v1074
    %v1085 = vpop.f32.mrf.mxu0
    %v1086 = vadd.f32 0.0, %v1085
    %v1087 = vpop.f32.mrf.mxu0
    %1088 = vdwg.mxu0
    %v1089 = vadd.f32 %v1001, %v1086
    %1090 = vmatpush.bf16.msra.mxu0 0
    %1091 = vmatpush.bf16.msra.mxu0 0
    %1092 = vmatpush.bf16.msra.mxu0 0
    %1093 = vmatpush.bf16.msra.mxu0 0
    %1094 = vmatpush.bf16.msra.mxu0 0
    %1095 = vmatpush.bf16.msra.mxu0 0
    %1096 = vmatpush.bf16.msra.mxu0 %v647
    %1097 = vmatpush.bf16.msra.mxu0 %v646
    %1098 = vmatmul.bf16.gmra.mxu0 %v1074
    %v1099 = vpop.f32.mrf.mxu0
    %v1100 = vadd.f32 %v637, %v1099
    %v1101 = vpop.f32.mrf.mxu0
    %1102 = vdwg.mxu0
    %v1103 = vxor.u32 %v1100, 2147483648
    %v1104 = vmul.f32 %v1103, 1.442695
    %v1105 = vpow.pop %v1104
    %v1106 = vadd.f32 %v1105, 1.0
    %v1107 = vrcp.pop %v1106
    %v1108 = vmul.f32 %v1106, %v1107
    %v1109 = vsub.f32 1.0, %v1108
    %v1110 = vmul.f32 %v1107, %v1109
    %v1111 = vadd.f32 %v1107, %v1110
    %vm1112 = vweird.f32 %v1106
    %vm1113 = vweird.f32 %v1107
    %vm1114 = vmor %vm1112, %vm1113
    %v1115 = vsel %vm1114, %v1107, %v1111
    %v1116 = vand.u32 2147483647, %v1106
    %vm1117 = vcmp.eq.f32.partialorder %v1116, 8.507059e+37
    %v1118 = vand.u32 %v1106, 2147483648
    %v1119 = vor.u32 1.1754944e-38, %v1118
    %v1120 = vsel %vm1117, %v1119, %v1115
    %v1121 = vmul.f32 1.0, %v1120
    %v1122 = vmul.f32 %v1121, 2.0
    %v1123 = vsub.f32 %v1122, 1.0
    %v1124 = vmul.f32 %v1121, %v1046
    %1126 = vrot.lane.b32.xlu0 %v1123, 64
    %v1127 = vpop.permute.xlu0 %1126
    %v1129 = vmul.f32 %v1121, %v1127
    %1131 = vrot.lane.b32.xlu0 %v1129, 32
    %v1132 = vpop.permute.xlu0 %1131
    %v1134 = vadd.f32 %v1124, %v1132
    %v1135 = vtanh.pop %v1134
    %1137 = vrot.lane.b32.xlu0 %v1135, 64
    %v1138 = vpop.permute.xlu0 %1137
    %v1140 = vmul.f32 %v1121, %v1138
    %v1141 = vpack.c.bf16 %v1140, %v1140
    %v1142 = vld [vmem:[#allocation2 + $0x90] sm:$0xf]
    %v1143 = vld [vmem:[#allocation2 + $0x94] sm:$0xf]
    %v1144 = vld [vmem:[#allocation2 + $0x98] sm:$0xf]
    %v1145 = vld [vmem:[#allocation2 + $0x9c] sm:$0xf]
    %1147 = vrot.lane.b32.xlu0 %v1141, 32
    %v1148 = vpop.permute.xlu0 %1147
    %v1153 = vunpack.c.l.b16 %v1142
    %v1154 = vunpack.c.l.b16 %v1143
    %v1155 = vunpack.c.l.b16 %v1144
    %v1156 = vunpack.c.l.b16 %v1145
    %v1157 = vpack.c.b16 %v1154, %v1153
    %v1158 = vpack.c.b16 %v1156, %v1155
    %v1162 = vsel %vm103, %v1148, 0
    %1164 = vmatpush.bf16.msra.mxu0 0
    %1165 = vmatpush.bf16.msra.mxu0 0
    %1166 = vmatpush.bf16.msra.mxu0 0
    %1167 = vmatpush.bf16.msra.mxu0 0
    %1168 = vmatpush.bf16.msra.mxu0 0
    %1169 = vmatpush.bf16.msra.mxu0 0
    %1170 = vmatpush.bf16.msra.mxu0 %v1158
    %1171 = vmatpush.bf16.msra.mxu0 %v1157
    %1172 = vmatmul.bf16.gmra.mxu0 %v1162
    %v1173 = vpop.f32.mrf.mxu0
    %v1174 = vadd.f32 0.0, %v1173
    %v1175 = vpop.f32.mrf.mxu0
    %1176 = vdwg.mxu0
    %v1177 = vadd.f32 %v1089, %v1174
    %vm1178 = vcmask 254976
    %1179 = vst.msk [vmem:[#allocation7] sm:$0x3] %vm1178, %v1177
    // Predicated region
    $region22: #{tpu_custom_call.1} parent=1 // pred_check
      _
    $region23: #{tpu_custom_call.1} parent=1 // pred_check_branch
      %1181 = sbr.rel (0) target = $region25
    $region24: #{tpu_custom_call.1} parent=1 // pred_region
      %1183 = vsyncadd [#allocation4], 0
      %s1185 = sshll.u32 [#allocation7], 4
      %s1186 = int_to_ptr.vmem [resolvable:$true] %s1185
      %s1187 = sshll.u32 %s3, 4
      %s1188 = int_to_ptr.hbm [resolvable:$true] %s1187
      %1190 = dma.vmem_to_hbm [thread:$0]  %s1186, 32, %s1188, [#allocation4]
    $region25: #{tpu_custom_call.1} parent=1 // pred_fallthru
      _
    // Predicated region
    $region26: #{tpu_custom_call.1} parent=1 // pred_check
      _
    $region27: #{tpu_custom_call.1} parent=1 // pred_check_branch
      %1192 = sbr.rel (0) target = $region29
    $region28: #{tpu_custom_call.1} parent=1 // pred_region
      %1194 = dma.done [#allocation4], 32
    $region29: #{tpu_custom_call.1} parent=1 // pred_fallthru
      _
    %1195 = vsyncpa [#allocation3], 1
    %1196 = vsyncpa [#allocation6], 1
    %1197 = vsyncpa [#allocation4], 1

</llo_original>
